<compile_context>
chip_gen: v5e
topology: v5e:2x2
jax: 0.10.0
libtpu: 0.0.40
codegen_flags: <defaults>
</compile_context>

<pallas_src>
import jax
import jax.numpy as jnp
from jax.experimental import pallas as pl
from jax.experimental.pallas import tpu as pltpu


def _head_kernel(x_ref, w1_ref, b1_ref, w2_ref, b2_ref, w3_ref, o_ref):
    # x_ref : [tb, S, 768] f32 (activation block; cast to bf16 in-kernel)
    # w1_ref: [768, 512] bf16   b1_ref: [1, 512] f32
    # w2_ref: [512, 256] bf16   b2_ref: [1, 256] f32
    # w3_ref: [1, 256]   f32
    # o_ref : [tb, S]    f32 (lane-dense log-probs; wrapper adds trailing dim)
    tb, S = o_ref.shape
    d_in = x_ref.shape[-1]

    # In-kernel bf16 cast (VPU, hidden under MXU) + tile-aligned flatten
    # (S % 8 == 0, d_in % 128 == 0 -> free relayout, no VMEM copy).
    x = x_ref[...].reshape(tb * S, d_in).astype(jnp.bfloat16)

    # fc1 + ReLU (+ dropout == identity in eval mode).  bf16 MXU, f32 accumulate.
    h = jnp.dot(x, w1_ref[...], preferred_element_type=jnp.float32)
    h = jnp.maximum(h + b1_ref[...], 0.0)

    # fc2 + ReLU (+ dropout == identity in eval mode).
    h = jnp.dot(h.astype(jnp.bfloat16), w2_ref[...],
                preferred_element_type=jnp.float32)
    h = jnp.maximum(h + b2_ref[...], 0.0)              # [tb*S, 256] f32

    # fc3: output width 1 -> VPU multiply + lane reduce (skip the N=1 MXU matvec).
    # fc3 bias dropped: uniform shift cancels under the sequence-axis LogSoftmax.
    h3 = h.reshape(tb, S, h.shape[-1])                 # tile-aligned -> free
    logits = jnp.sum(h3 * w3_ref[...], axis=-1)        # [tb, S] f32

    # LogSoftmax over the sequence axis (== dim=1 of the [B, S, 1] tensor),
    # a cheap lane-axis reduction on the [tb, S] tile.
    m = jnp.max(logits, axis=-1, keepdims=True)
    lse = m + jnp.log(jnp.sum(jnp.exp(logits - m), axis=-1, keepdims=True))
    o_ref[...] = (logits - lse).astype(o_ref.dtype)


def _batch_tile(B, S):
    """Batch tile: keep per-block live VMEM ~<= 8 MiB and the [tb, S] output
    block sublane-legal (tb multiple of 8, or tb == B)."""
    target_rows = 1024                       # ~8 KiB/row live (x f32 + h1 + h2)
    tb = max(1, target_rows // max(S, 1))
    if tb >= B:
        return B
    tb = max(8, (tb // 8) * 8)
    return min(tb, B)


def prepare_params(params):
    """One-time conversion to kernel layout: bf16 matmul weights, f32 biases,
    fc3 weight as a [1, 256] row.  fc3 bias is dropped (no-op under LogSoftmax
    over dim=1)."""
    w1, b1, w2, b2, w3, b3 = params
    del b3
    return (w1.astype(jnp.bfloat16),
            b1.reshape(1, -1).astype(jnp.float32),
            w2.astype(jnp.bfloat16),
            b2.reshape(1, -1).astype(jnp.float32),
            w3.reshape(1, -1).astype(jnp.float32))


def classifier_head(last_hidden_state, prepared):
    """last_hidden_state: [B, S, 768] float32 -> log-probs [B, S, 1] float32."""
    B, S, D = last_hidden_state.shape
    w1, b1, w2, b2, w3 = prepared
    assert D == w1.shape[0]
    assert S % 8 == 0, "pad S to a multiple of 8 (and mask padded logits!)"
    # TODO(synk): real VisualBERT inputs with padded sequences need padded
    #             positions masked to -inf before the sequence-axis LogSoftmax.

    d1, d2 = w1.shape[1], w2.shape[1]
    tb = _batch_tile(B, S)
    grid = (pl.cdiv(B, tb),)

    M = B * S
    cost = pl.CostEstimate(
        flops=2 * M * (D * d1 + d1 * d2 + d2),
        bytes_accessed=(M * D * 4 + M * 4
                        + (D * d1 + d1 * d2) * 2 + (d1 + 2 * d2) * 4),
        transcendentals=M,
    )

    def _const_spec(shape):
        return pl.BlockSpec(shape, lambda i, _n=len(shape): (0,) * _n)

    out2d = pl.pallas_call(
        _head_kernel,
        out_shape=jax.ShapeDtypeStruct((B, S), jnp.float32),
        grid=grid,
        in_specs=[
            pl.BlockSpec((tb, S, D), lambda i: (i, 0, 0)),  # activations: tiled
            _const_spec((D, d1)),                           # w1 (fetched once)
            _const_spec((1, d1)),                           # b1
            _const_spec((d1, d2)),                          # w2
            _const_spec((1, d2)),                           # b2
            _const_spec((1, d2)),                           # w3 row
        ],
        out_specs=pl.BlockSpec((tb, S), lambda i: (i, 0)),
        compiler_params=pltpu.CompilerParams(
            dimension_semantics=("parallel",)),              # v7x megacore
        cost_estimate=cost,
    )(last_hidden_state.astype(jnp.float32), w1, b1, w2, b2, w3)

    return out2d.reshape(B, S, 1)


def init_params(key):
    """Deterministic synthetic weights matching nn.Linear(768,512)/(512,256)/(256,1).

    Weights stored as [D_in, D_out] (= torch weight.T) so y = x @ W + b; the fc3
    weight is stored as a [1, 256] row (== torch fc3.weight)."""
    k1, k2, k3, k4, k5, k6 = jax.random.split(key, 6)
    w1 = jax.random.normal(k1, (768, 512), jnp.float32) * (1.0 / 768) ** 0.5
    b1 = jax.random.normal(k2, (1, 512), jnp.float32) * 0.01
    w2 = jax.random.normal(k3, (512, 256), jnp.float32) * (1.0 / 512) ** 0.5
    b2 = jax.random.normal(k4, (1, 256), jnp.float32) * 0.01
    w3 = jax.random.normal(k5, (1, 256), jnp.float32) * (1.0 / 256) ** 0.5
    b3 = jax.random.normal(k6, (1,), jnp.float32) * 0.01
    return (w1, b1, w2, b2, w3, b3)


def reference_head(x, params, matmul_dtype=None):
    """Pure-JAX reference.  matmul_dtype=None -> full f32 (PyTorch semantics);
    matmul_dtype=bf16 -> mirrors the kernel's mixed-precision compute.  Keeps
    the fc3 bias to demonstrate it cancels under LogSoftmax(dim=1)."""
    w1, b1, w2, b2, w3, b3 = params
    cast = (lambda a: a) if matmul_dtype is None else (lambda a: a.astype(matmul_dtype))
    h = jnp.dot(cast(x), cast(w1), preferred_element_type=jnp.float32) + b1
    h = jnp.maximum(h, 0.0)
    h = jnp.dot(cast(h), cast(w2), preferred_element_type=jnp.float32) + b2
    h = jnp.maximum(h, 0.0)
    logits = jnp.sum(h * w3, axis=-1, keepdims=True) + b3[0]   # [B, S, 1]
    return jax.nn.log_softmax(logits, axis=1)


if __name__ == "__main__":
    key = jax.random.PRNGKey(0)
    k_par, k_hid, k_vis = jax.random.split(key, 3)

    # Small shapes consistent with VisualBERT-style inputs.
    B, T, V = 2, 8, 8          # batch, text tokens, visual tokens
    S = T + V                  # sequence length of last_hidden_state
    HIDDEN = 768

    # Forward-signature inputs (shapes only — backbone itself is not translated).
    input_ids = jnp.ones((B, T), jnp.int32)
    attention_mask = jnp.ones((B, T), jnp.int32)
    token_type_ids = jnp.zeros((B, T), jnp.int32)
    visual_embeds = jax.random.normal(k_vis, (B, V, 2048), jnp.float32)
    visual_attention_mask = jnp.ones((B, V), jnp.int32)
    visual_token_type_ids = jnp.ones((B, V), jnp.int32)

    # Deterministic stand-in for model(...).last_hidden_state -> [B, S, 768].
    last_hidden_state = jax.random.normal(k_hid, (B, S, HIDDEN), jnp.float32)

    params = init_params(k_par)
    prepared = prepare_params(params)       # one-time bf16 weight conversion

    out = classifier_head(last_hidden_state, prepared)
    out = jax.block_until_ready(out)
    assert out.shape == (B, S, 1)

    # Tight check against a reference that mirrors the kernel's bf16-matmul /
    # f32-elementwise precision split (fc3 bias cancels under LogSoftmax).
    ref_mixed = reference_head(last_hidden_state, params, matmul_dtype=jnp.bfloat16)
    assert jnp.allclose(out, ref_mixed, atol=1e-3, rtol=1e-3)

    # Loose check against full-f32 PyTorch semantics (bf16 matmul tolerance).
    ref_f32 = reference_head(last_hidden_state, params)
    assert jnp.allclose(out, ref_f32, atol=0.25, rtol=0.25)

    print("KERNEL_OK")
</pallas_src>

<mosaic_0001>
module attributes {stable_mosaic.version = 11 : i64} {
  func.func @_head_kernel(%arg0: i32, %arg1: memref<2x16x768xf32, #tpu.memory_space<vmem>>, %arg2: memref<768x512xbf16, #tpu.memory_space<vmem>>, %arg3: memref<1x512xf32, #tpu.memory_space<vmem>>, %arg4: memref<512x256xbf16, #tpu.memory_space<vmem>>, %arg5: memref<1x256xf32, #tpu.memory_space<vmem>>, %arg6: memref<1x256xf32, #tpu.memory_space<vmem>>, %arg7: memref<2x16xf32, #tpu.memory_space<vmem>>) attributes {dimension_semantics = [#tpu.dimension_semantics<parallel>], iteration_bounds = array<i64: 1>, scalar_prefetch = 0 : i64, scratch_operands = 0 : i64, tpu.core_type = #tpu.core_type<tc>, window_params = [{transform_indices = @transform_0, window_bounds = array<i64: 2, 16, 768>}, {pipeline_mode = #tpu.pipeline_mode<synchronous>, transform_indices = @transform_1, window_bounds = array<i64: 768, 512>}, {pipeline_mode = #tpu.pipeline_mode<synchronous>, transform_indices = @transform_2, window_bounds = array<i64: 1, 512>}, {pipeline_mode = #tpu.pipeline_mode<synchronous>, transform_indices = @transform_3, window_bounds = array<i64: 512, 256>}, {pipeline_mode = #tpu.pipeline_mode<synchronous>, transform_indices = @transform_4, window_bounds = array<i64: 1, 256>}, {pipeline_mode = #tpu.pipeline_mode<synchronous>, transform_indices = @transform_5, window_bounds = array<i64: 1, 256>}, {transform_indices = @transform_6, window_bounds = array<i64: 2, 16>}]} {
    %c0 = arith.constant 0 : index
    %c0_0 = arith.constant 0 : index
    %c0_1 = arith.constant 0 : index
    %0 = vector.load %arg1[%c0, %c0_0, %c0_1] : memref<2x16x768xf32, #tpu.memory_space<vmem>>, vector<2x16x768xf32>
    %1 = vector.shape_cast %0 : vector<2x16x768xf32> to vector<32x768xf32>
    %2 = arith.truncf %1 : vector<32x768xf32> to vector<32x768xbf16>
    %c0_2 = arith.constant 0 : index
    %c0_3 = arith.constant 0 : index
    %3 = vector.load %arg2[%c0_2, %c0_3] : memref<768x512xbf16, #tpu.memory_space<vmem>>, vector<768x512xbf16>
    %cst = arith.constant dense<0.000000e+00> : vector<32x512xf32>
    %4 = tpu.matmul %2, %3, %cst {dimension_numbers = #tpu.dot_dimension_numbers<[1], [0], [0], [1], [0, 0, 1, 1], [], []>} : vector<32x768xbf16>, vector<768x512xbf16>, vector<32x512xf32> -> vector<32x512xf32>
    %c0_4 = arith.constant 0 : index
    %c0_5 = arith.constant 0 : index
    %5 = vector.load %arg3[%c0_4, %c0_5] : memref<1x512xf32, #tpu.memory_space<vmem>>, vector<1x512xf32>
    %6 = vector.broadcast %5 : vector<1x512xf32> to vector<32x512xf32>
    %7 = arith.addf %4, %6 : vector<32x512xf32>
    %cst_6 = arith.constant 0.000000e+00 : f32
    %8 = vector.broadcast %cst_6 : f32 to vector<32x512xf32>
    %9 = arith.maximumf %7, %8 : vector<32x512xf32>
    %10 = arith.truncf %9 : vector<32x512xf32> to vector<32x512xbf16>
    %c0_7 = arith.constant 0 : index
    %c0_8 = arith.constant 0 : index
    %11 = vector.load %arg4[%c0_7, %c0_8] : memref<512x256xbf16, #tpu.memory_space<vmem>>, vector<512x256xbf16>
    %cst_9 = arith.constant dense<0.000000e+00> : vector<32x256xf32>
    %12 = tpu.matmul %10, %11, %cst_9 {dimension_numbers = #tpu.dot_dimension_numbers<[1], [0], [0], [1], [0, 0, 1, 1], [], []>} : vector<32x512xbf16>, vector<512x256xbf16>, vector<32x256xf32> -> vector<32x256xf32>
    %c0_10 = arith.constant 0 : index
    %c0_11 = arith.constant 0 : index
    %13 = vector.load %arg5[%c0_10, %c0_11] : memref<1x256xf32, #tpu.memory_space<vmem>>, vector<1x256xf32>
    %14 = vector.broadcast %13 : vector<1x256xf32> to vector<32x256xf32>
    %15 = arith.addf %12, %14 : vector<32x256xf32>
    %cst_12 = arith.constant 0.000000e+00 : f32
    %16 = vector.broadcast %cst_12 : f32 to vector<32x256xf32>
    %17 = arith.maximumf %15, %16 : vector<32x256xf32>
    %18 = vector.shape_cast %17 : vector<32x256xf32> to vector<2x16x256xf32>
    %c0_13 = arith.constant 0 : index
    %c0_14 = arith.constant 0 : index
    %19 = vector.load %arg6[%c0_13, %c0_14] : memref<1x256xf32, #tpu.memory_space<vmem>>, vector<1x256xf32>
    %20 = vector.shape_cast %19 : vector<1x256xf32> to vector<1x1x256xf32>
    %21 = vector.broadcast %20 : vector<1x1x256xf32> to vector<2x16x256xf32>
    %22 = arith.mulf %18, %21 : vector<2x16x256xf32>
    %cst_15 = arith.constant dense<0.000000e+00> : vector<2x16xf32>
    %23 = vector.multi_reduction <add>, %22, %cst_15 [2] : vector<2x16x256xf32> to vector<2x16xf32>
    %cst_16 = arith.constant dense<0xFF800000> : vector<2xf32>
    %24 = vector.multi_reduction <maximumf>, %23, %cst_16 [1] : vector<2x16xf32> to vector<2xf32>
    %25 = vector.shape_cast %24 : vector<2xf32> to vector<2x1xf32>
    %26 = vector.broadcast %25 : vector<2x1xf32> to vector<2x16xf32>
    %27 = arith.subf %23, %26 : vector<2x16xf32>
    %28 = math.exp %27 : vector<2x16xf32>
    %cst_17 = arith.constant dense<0.000000e+00> : vector<2xf32>
    %29 = vector.multi_reduction <add>, %28, %cst_17 [1] : vector<2x16xf32> to vector<2xf32>
    %30 = vector.shape_cast %29 : vector<2xf32> to vector<2x1xf32>
    %31 = math.log %30 : vector<2x1xf32>
    %32 = arith.addf %25, %31 : vector<2x1xf32>
    %33 = vector.broadcast %32 : vector<2x1xf32> to vector<2x16xf32>
    %34 = arith.subf %23, %33 : vector<2x16xf32>
    %c0_18 = arith.constant 0 : index
    %c0_19 = arith.constant 0 : index
    %35 = vector.load %arg7[%c0_18, %c0_19] : memref<2x16xf32, #tpu.memory_space<vmem>>, vector<2x16xf32>
    tpu.vector_store %arg7[%c0_18, %c0_19], %34 {strides = array<i32>} : memref<2x16xf32, #tpu.memory_space<vmem>>, vector<2x16xf32>,
    return
  }
  func.func @transform_0(%arg0: i32) -> (i32, i32, i32) {
    %c0_i32 = arith.constant 0 : i32
    %c0_i32_0 = arith.constant 0 : i32
    %c0_i32_1 = arith.constant 0 : i32
    return %arg0, %c0_i32, %c0_i32_0 : i32, i32, i32
  }
  func.func @transform_1(%arg0: i32) -> (i32, i32) {
    %c0_i32 = arith.constant 0 : i32
    %c0_i32_0 = arith.constant 0 : i32
    %c0_i32_1 = arith.constant 0 : i32
    return %c0_i32, %c0_i32_0 : i32, i32
  }
  func.func @transform_2(%arg0: i32) -> (i32, i32) {
    %c0_i32 = arith.constant 0 : i32
    %c0_i32_0 = arith.constant 0 : i32
    %c0_i32_1 = arith.constant 0 : i32
    return %c0_i32, %c0_i32_0 : i32, i32
  }
  func.func @transform_3(%arg0: i32) -> (i32, i32) {
    %c0_i32 = arith.constant 0 : i32
    %c0_i32_0 = arith.constant 0 : i32
    %c0_i32_1 = arith.constant 0 : i32
    return %c0_i32, %c0_i32_0 : i32, i32
  }
  func.func @transform_4(%arg0: i32) -> (i32, i32) {
    %c0_i32 = arith.constant 0 : i32
    %c0_i32_0 = arith.constant 0 : i32
    %c0_i32_1 = arith.constant 0 : i32
    return %c0_i32, %c0_i32_0 : i32, i32
  }
  func.func @transform_5(%arg0: i32) -> (i32, i32) {
    %c0_i32 = arith.constant 0 : i32
    %c0_i32_0 = arith.constant 0 : i32
    %c0_i32_1 = arith.constant 0 : i32
    return %c0_i32, %c0_i32_0 : i32, i32
  }
  func.func @transform_6(%arg0: i32) -> (i32, i32) {
    %c0_i32 = arith.constant 0 : i32
    %c0_i32_0 = arith.constant 0 : i32
    return %arg0, %c0_i32 : i32, i32
  }
}

</mosaic_0001>

<llo_original>
// kernel: tpu_custom_call.1
$region0: #{tpu_custom_call.1}
  #allocation0 [shape = 'u32[]', space=smem, size = 0x4, offset = 0x4, fixed_abs, tag = 'smem constant byte address 0x4 - core index']
  #allocation1 [shape = 'u32[72,128]{1,0:T(1,128)}', space=vmem, size = 0x9000, scoped, tag = 'internal scratch']
  %s0 = inlined_call_operand.hbm [shape: f32[2,16,768], index: 0, kind: input, shape index: {}]
  %s1 = inlined_call_operand.hbm [shape: bf16[768,512], index: 1, kind: input, shape index: {}]
  %s2 = inlined_call_operand.hbm [shape: f32[1,512], index: 2, kind: input, shape index: {}]
  %s3 = inlined_call_operand.hbm [shape: bf16[512,256], index: 3, kind: input, shape index: {}]
  %s4 = inlined_call_operand.vmem [shape: f32[1,256], index: 4, kind: input, shape index: {}]
  %s5 = inlined_call_operand.vmem [shape: f32[1,256], index: 5, kind: input, shape index: {}]
  %s6 = inlined_call_operand.hbm [shape: f32[2,16], index: 6, kind: output, shape index: {}]
  %s7 = sld [smem:[#allocation0]]
  $region50: #{tpu_custom_call.1} parent=0
    _
  %s9 = ssub.s32 1, %s7
  %s10 = scalar_select 0, %s9, %s7
  $region1: #{tpu_custom_call.1} parent=0
    #allocation2 [shape = 'u8[98304]{0}', space=vmem, size = 0x18000, scoped, tag = 'input window, operand 0, single buffered']
    #allocation3 [shape = 's32[1]{0}', space=sflag, size = 0x4, scoped, tag = 'scoped memory for tpu_custom_call.1']
    #allocation4 [shape = 's32[1]{0}', space=sflag, size = 0x4, scoped, tag = 'scoped memory for tpu_custom_call.1']
    #allocation5 [shape = 'u8[786432]{0}', space=vmem, size = 0xc0000, scoped, tag = 'input window, operand 1, single buffered']
    #allocation6 [shape = 's32[1]{0}', space=sflag, size = 0x4, scoped, tag = 'scoped memory for tpu_custom_call.1']
    #allocation7 [shape = 'u8[2048]{0}', space=vmem, size = 0x800, scoped, tag = 'input window, operand 2, single buffered']
    #allocation8 [shape = 'u8[262144]{0}', space=vmem, size = 0x40000, scoped, tag = 'input window, operand 3, single buffered']
    #allocation9 [shape = 's32[1]{0}', space=sflag, size = 0x4, scoped, tag = 'scoped memory for tpu_custom_call.1']
    #allocation10 [shape = 'u8[1024]{0}', space=vmem, size = 0x400, scoped, tag = 'output window, operand 0, single buffered']
    %11 = vsyncpa [#allocation3], 0
    %12 = vsyncpa [#allocation6], 0
    %13 = vsyncpa [#allocation9], 0
    %14 = vsyncpa [#allocation4], 0
    // Predicated region
    $region2: #{tpu_custom_call.1} parent=1 // pred_check
      _
    $region3: #{tpu_custom_call.1} parent=1 // pred_check_branch
      %16 = sbr.rel (0) target = $region5
    $region4: #{tpu_custom_call.1} parent=1 // pred_region
      %18 = vsyncadd [#allocation3], 0
      %s19 = sshll.u32 %s0, 4
      %s20 = int_to_ptr.hbm [resolvable:$true] %s19
      %s21 = sshll.u32 [#allocation2], 4
      %s22 = int_to_ptr.vmem [resolvable:$true] %s21
      %27 = dma.hbm_to_vmem [thread:$0]  %s20, 3072, %s22, [#allocation3], 768, 768, 48
    $region5: #{tpu_custom_call.1} parent=1 // pred_fallthru
      _
    // Predicated region
    $region6: #{tpu_custom_call.1} parent=1 // pred_check
      _
    $region7: #{tpu_custom_call.1} parent=1 // pred_check_branch
      %29 = sbr.rel (0) target = $region9
    $region8: #{tpu_custom_call.1} parent=1 // pred_region
      %31 = vsyncadd [#allocation6], 0
      %s32 = sshll.u32 %s1, 4
      %s33 = int_to_ptr.hbm [resolvable:$true] %s32
      %s34 = sshll.u32 [#allocation5], 4
      %s35 = int_to_ptr.vmem [resolvable:$true] %s34
      %40 = dma.hbm_to_vmem [thread:$0]  %s33, 24576, %s35, [#allocation6], 256, 256, 16
    $region9: #{tpu_custom_call.1} parent=1 // pred_fallthru
      _
    // Predicated region
    $region10: #{tpu_custom_call.1} parent=1 // pred_check
      _
    $region11: #{tpu_custom_call.1} parent=1 // pred_check_branch
      %42 = sbr.rel (0) target = $region13
    $region12: #{tpu_custom_call.1} parent=1 // pred_region
      %44 = vsyncadd [#allocation6], 0
      %s46 = sshll.u32 %s2, 4
      %s47 = int_to_ptr.hbm [resolvable:$true] %s46
      %s48 = sshll.u32 [#allocation7], 4
      %s49 = int_to_ptr.vmem [resolvable:$true] %s48
      %51 = dma.hbm_to_vmem [thread:$0]  %s47, 64, %s49, [#allocation6]
    $region13: #{tpu_custom_call.1} parent=1 // pred_fallthru
      _
    // Predicated region
    $region14: #{tpu_custom_call.1} parent=1 // pred_check
      _
    $region15: #{tpu_custom_call.1} parent=1 // pred_check_branch
      %53 = sbr.rel (0) target = $region17
    $region16: #{tpu_custom_call.1} parent=1 // pred_region
      %55 = vsyncadd [#allocation9], 0
      %s56 = sshll.u32 %s3, 4
      %s57 = int_to_ptr.hbm [resolvable:$true] %s56
      %s58 = sshll.u32 [#allocation8], 4
      %s59 = int_to_ptr.vmem [resolvable:$true] %s58
      %64 = dma.hbm_to_vmem [thread:$0]  %s57, 8192, %s59, [#allocation9], 128, 128, 8
    $region17: #{tpu_custom_call.1} parent=1 // pred_fallthru
      _
    // Predicated region
    $region18: #{tpu_custom_call.1} parent=1 // pred_check
      _
    $region19: #{tpu_custom_call.1} parent=1 // pred_check_branch
      %66 = sbr.rel (0) target = $region21
    $region20: #{tpu_custom_call.1} parent=1 // pred_region
      _
    $region21: #{tpu_custom_call.1} parent=1 // pred_fallthru
      _
    // Predicated region
    $region22: #{tpu_custom_call.1} parent=1 // pred_check
      _
    $region23: #{tpu_custom_call.1} parent=1 // pred_check_branch
      %68 = sbr.rel (0) target = $region25
    $region24: #{tpu_custom_call.1} parent=1 // pred_region
      _
    $region25: #{tpu_custom_call.1} parent=1 // pred_fallthru
      _
    // Predicated region
    $region26: #{tpu_custom_call.1} parent=1 // pred_check
      _
    $region27: #{tpu_custom_call.1} parent=1 // pred_check_branch
      %70 = sbr.rel (0) target = $region29
    $region28: #{tpu_custom_call.1} parent=1 // pred_region
      %72 = dma.done [#allocation3], 3072
    $region29: #{tpu_custom_call.1} parent=1 // pred_fallthru
      _
    // Predicated region
    $region30: #{tpu_custom_call.1} parent=1 // pred_check
      _
    $region31: #{tpu_custom_call.1} parent=1 // pred_check_branch
      %74 = sbr.rel (0) target = $region33
    $region32: #{tpu_custom_call.1} parent=1 // pred_region
      %76 = dma.done [#allocation6], 24576
    $region33: #{tpu_custom_call.1} parent=1 // pred_fallthru
      _
    // Predicated region
    $region34: #{tpu_custom_call.1} parent=1 // pred_check
      _
    $region35: #{tpu_custom_call.1} parent=1 // pred_check_branch
      %78 = sbr.rel (0) target = $region37
    $region36: #{tpu_custom_call.1} parent=1 // pred_region
      %80 = dma.done [#allocation6], 64
    $region37: #{tpu_custom_call.1} parent=1 // pred_fallthru
      _
    // Predicated region
    $region38: #{tpu_custom_call.1} parent=1 // pred_check
      _
    $region39: #{tpu_custom_call.1} parent=1 // pred_check_branch
      %82 = sbr.rel (0) target = $region41
    $region40: #{tpu_custom_call.1} parent=1 // pred_region
      %84 = dma.done [#allocation9], 8192
    $region41: #{tpu_custom_call.1} parent=1 // pred_fallthru
      _
    %v85 = vld [vmem:[#allocation2] sm:$0xff]
    %v86 = vld [vmem:[#allocation2 + $0x8] sm:$0xff]
    %v87 = vld [vmem:[#allocation2 + $0x10] sm:$0xff]
    %v88 = vld [vmem:[#allocation2 + $0x18] sm:$0xff]
    %v89 = vld [vmem:[#allocation2 + $0x20] sm:$0xff]
    %v90 = vld [vmem:[#allocation2 + $0x28] sm:$0xff]
    %v91 = vld [vmem:[#allocation2 + $0x30] sm:$0xff]
    %v92 = vld [vmem:[#allocation2 + $0x38] sm:$0xff]
    %v93 = vld [vmem:[#allocation2 + $0x40] sm:$0xff]
    %v94 = vld [vmem:[#allocation2 + $0x48] sm:$0xff]
    %v95 = vld [vmem:[#allocation2 + $0x50] sm:$0xff]
    %v96 = vld [vmem:[#allocation2 + $0x58] sm:$0xff]
    %v97 = vld [vmem:[#allocation2 + $0x60] sm:$0xff]
    %v98 = vld [vmem:[#allocation2 + $0x68] sm:$0xff]
    %v99 = vld [vmem:[#allocation2 + $0x70] sm:$0xff]
    %v100 = vld [vmem:[#allocation2 + $0x78] sm:$0xff]
    %v101 = vld [vmem:[#allocation2 + $0x80] sm:$0xff]
    %v102 = vld [vmem:[#allocation2 + $0x88] sm:$0xff]
    %v103 = vld [vmem:[#allocation2 + $0x90] sm:$0xff]
    %v104 = vld [vmem:[#allocation2 + $0x98] sm:$0xff]
    %v105 = vld [vmem:[#allocation2 + $0xa0] sm:$0xff]
    %v106 = vld [vmem:[#allocation2 + $0xa8] sm:$0xff]
    %v107 = vld [vmem:[#allocation2 + $0xb0] sm:$0xff]
    %v108 = vld [vmem:[#allocation2 + $0xb8] sm:$0xff]
    %v109 = vpack.c.bf16 %v91, %v85
    %v110 = vpack.c.bf16 %v92, %v86
    %v111 = vpack.c.bf16 %v93, %v87
    %v112 = vpack.c.bf16 %v94, %v88
    %v113 = vpack.c.bf16 %v95, %v89
    %v114 = vpack.c.bf16 %v96, %v90
    %v115 = vpack.c.bf16 %v103, %v97
    %v116 = vpack.c.bf16 %v104, %v98
    %v117 = vpack.c.bf16 %v105, %v99
    %v118 = vpack.c.bf16 %v106, %v100
    %v119 = vpack.c.bf16 %v107, %v101
    %v120 = vpack.c.bf16 %v108, %v102
    %v121 = vld [vmem:[#allocation5] sm:$0xff]
    %v122 = vld [vmem:[#allocation5 + $0x8] sm:$0xff]
    %v123 = vld [vmem:[#allocation5 + $0x10] sm:$0xff]
    %v124 = vld [vmem:[#allocation5 + $0x18] sm:$0xff]
    %v125 = vld [vmem:[#allocation5 + $0x20] sm:$0xff]
    %v126 = vld [vmem:[#allocation5 + $0x28] sm:$0xff]
    %v127 = vld [vmem:[#allocation5 + $0x30] sm:$0xff]
    %v128 = vld [vmem:[#allocation5 + $0x38] sm:$0xff]
    %v129 = vld [vmem:[#allocation5 + $0x40] sm:$0xff]
    %v130 = vld [vmem:[#allocation5 + $0x48] sm:$0xff]
    %v131 = vld [vmem:[#allocation5 + $0x50] sm:$0xff]
    %v132 = vld [vmem:[#allocation5 + $0x58] sm:$0xff]
    %v133 = vld [vmem:[#allocation5 + $0x60] sm:$0xff]
    %v134 = vld [vmem:[#allocation5 + $0x68] sm:$0xff]
    %v135 = vld [vmem:[#allocation5 + $0x70] sm:$0xff]
    %v136 = vld [vmem:[#allocation5 + $0x78] sm:$0xff]
    %v137 = vld [vmem:[#allocation5 + $0x80] sm:$0xff]
    %v138 = vld [vmem:[#allocation5 + $0x88] sm:$0xff]
    %v139 = vld [vmem:[#allocation5 + $0x90] sm:$0xff]
    %v140 = vld [vmem:[#allocation5 + $0x98] sm:$0xff]
    %v141 = vld [vmem:[#allocation5 + $0xa0] sm:$0xff]
    %v142 = vld [vmem:[#allocation5 + $0xa8] sm:$0xff]
    %v143 = vld [vmem:[#allocation5 + $0xb0] sm:$0xff]
    %v144 = vld [vmem:[#allocation5 + $0xb8] sm:$0xff]
    %v145 = vld [vmem:[#allocation5 + $0xc0] sm:$0xff]
    %v146 = vld [vmem:[#allocation5 + $0xc8] sm:$0xff]
    %v147 = vld [vmem:[#allocation5 + $0xd0] sm:$0xff]
    %v148 = vld [vmem:[#allocation5 + $0xd8] sm:$0xff]
    %v149 = vld [vmem:[#allocation5 + $0xe0] sm:$0xff]
    %v150 = vld [vmem:[#allocation5 + $0xe8] sm:$0xff]
    %v151 = vld [vmem:[#allocation5 + $0xf0] sm:$0xff]
    %v152 = vld [vmem:[#allocation5 + $0xf8] sm:$0xff]
    %v153 = vld [vmem:[#allocation5 + $0x100] sm:$0xff]
    %v154 = vld [vmem:[#allocation5 + $0x108] sm:$0xff]
    %v155 = vld [vmem:[#allocation5 + $0x110] sm:$0xff]
    %v156 = vld [vmem:[#allocation5 + $0x118] sm:$0xff]
    %v157 = vld [vmem:[#allocation5 + $0x120] sm:$0xff]
    %v158 = vld [vmem:[#allocation5 + $0x128] sm:$0xff]
    %v159 = vld [vmem:[#allocation5 + $0x130] sm:$0xff]
    %v160 = vld [vmem:[#allocation5 + $0x138] sm:$0xff]
    %v161 = vld [vmem:[#allocation5 + $0x140] sm:$0xff]
    %v162 = vld [vmem:[#allocation5 + $0x148] sm:$0xff]
    %v163 = vld [vmem:[#allocation5 + $0x150] sm:$0xff]
    %v164 = vld [vmem:[#allocation5 + $0x158] sm:$0xff]
    %v165 = vld [vmem:[#allocation5 + $0x160] sm:$0xff]
    %v166 = vld [vmem:[#allocation5 + $0x168] sm:$0xff]
    %v167 = vld [vmem:[#allocation5 + $0x170] sm:$0xff]
    %v168 = vld [vmem:[#allocation5 + $0x178] sm:$0xff]
    %v169 = vld [vmem:[#allocation5 + $0x180] sm:$0xff]
    %v170 = vld [vmem:[#allocation5 + $0x188] sm:$0xff]
    %v171 = vld [vmem:[#allocation5 + $0x190] sm:$0xff]
    %v172 = vld [vmem:[#allocation5 + $0x198] sm:$0xff]
    %v173 = vld [vmem:[#allocation5 + $0x1a0] sm:$0xff]
    %v174 = vld [vmem:[#allocation5 + $0x1a8] sm:$0xff]
    %v175 = vld [vmem:[#allocation5 + $0x1b0] sm:$0xff]
    %v176 = vld [vmem:[#allocation5 + $0x1b8] sm:$0xff]
    %v177 = vld [vmem:[#allocation5 + $0x1c0] sm:$0xff]
    %v178 = vld [vmem:[#allocation5 + $0x1c8] sm:$0xff]
    %v179 = vld [vmem:[#allocation5 + $0x1d0] sm:$0xff]
    %v180 = vld [vmem:[#allocation5 + $0x1d8] sm:$0xff]
    %v181 = vld [vmem:[#allocation5 + $0x1e0] sm:$0xff]
    %v182 = vld [vmem:[#allocation5 + $0x1e8] sm:$0xff]
    %v183 = vld [vmem:[#allocation5 + $0x1f0] sm:$0xff]
    %v184 = vld [vmem:[#allocation5 + $0x1f8] sm:$0xff]
    %v185 = vld [vmem:[#allocation5 + $0x200] sm:$0xff]
    %v186 = vld [vmem:[#allocation5 + $0x208] sm:$0xff]
    %v187 = vld [vmem:[#allocation5 + $0x210] sm:$0xff]
    %v188 = vld [vmem:[#allocation5 + $0x218] sm:$0xff]
    %v189 = vld [vmem:[#allocation5 + $0x220] sm:$0xff]
    %v190 = vld [vmem:[#allocation5 + $0x228] sm:$0xff]
    %v191 = vld [vmem:[#allocation5 + $0x230] sm:$0xff]
    %v192 = vld [vmem:[#allocation5 + $0x238] sm:$0xff]
    %v193 = vld [vmem:[#allocation5 + $0x240] sm:$0xff]
    %v194 = vld [vmem:[#allocation5 + $0x248] sm:$0xff]
    %v195 = vld [vmem:[#allocation5 + $0x250] sm:$0xff]
    %v196 = vld [vmem:[#allocation5 + $0x258] sm:$0xff]
    %v197 = vld [vmem:[#allocation5 + $0x260] sm:$0xff]
    %v198 = vld [vmem:[#allocation5 + $0x268] sm:$0xff]
    %v199 = vld [vmem:[#allocation5 + $0x270] sm:$0xff]
    %v200 = vld [vmem:[#allocation5 + $0x278] sm:$0xff]
    %v201 = vld [vmem:[#allocation5 + $0x280] sm:$0xff]
    %v202 = vld [vmem:[#allocation5 + $0x288] sm:$0xff]
    %v203 = vld [vmem:[#allocation5 + $0x290] sm:$0xff]
    %v204 = vld [vmem:[#allocation5 + $0x298] sm:$0xff]
    %v205 = vld [vmem:[#allocation5 + $0x2a0] sm:$0xff]
    %v206 = vld [vmem:[#allocation5 + $0x2a8] sm:$0xff]
    %v207 = vld [vmem:[#allocation5 + $0x2b0] sm:$0xff]
    %v208 = vld [vmem:[#allocation5 + $0x2b8] sm:$0xff]
    %v209 = vld [vmem:[#allocation5 + $0x2c0] sm:$0xff]
    %v210 = vld [vmem:[#allocation5 + $0x2c8] sm:$0xff]
    %v211 = vld [vmem:[#allocation5 + $0x2d0] sm:$0xff]
    %v212 = vld [vmem:[#allocation5 + $0x2d8] sm:$0xff]
    %v213 = vld [vmem:[#allocation5 + $0x2e0] sm:$0xff]
    %v214 = vld [vmem:[#allocation5 + $0x2e8] sm:$0xff]
    %v215 = vld [vmem:[#allocation5 + $0x2f0] sm:$0xff]
    %v216 = vld [vmem:[#allocation5 + $0x2f8] sm:$0xff]
    %v217 = vld [vmem:[#allocation5 + $0x300] sm:$0xff]
    %v218 = vld [vmem:[#allocation5 + $0x308] sm:$0xff]
    %v219 = vld [vmem:[#allocation5 + $0x310] sm:$0xff]
    %v220 = vld [vmem:[#allocation5 + $0x318] sm:$0xff]
    %v221 = vld [vmem:[#allocation5 + $0x320] sm:$0xff]
    %v222 = vld [vmem:[#allocation5 + $0x328] sm:$0xff]
    %v223 = vld [vmem:[#allocation5 + $0x330] sm:$0xff]
    %v224 = vld [vmem:[#allocation5 + $0x338] sm:$0xff]
    %v225 = vld [vmem:[#allocation5 + $0x340] sm:$0xff]
    %v226 = vld [vmem:[#allocation5 + $0x348] sm:$0xff]
    %v227 = vld [vmem:[#allocation5 + $0x350] sm:$0xff]
    %v228 = vld [vmem:[#allocation5 + $0x358] sm:$0xff]
    %v229 = vld [vmem:[#allocation5 + $0x360] sm:$0xff]
    %v230 = vld [vmem:[#allocation5 + $0x368] sm:$0xff]
    %v231 = vld [vmem:[#allocation5 + $0x370] sm:$0xff]
    %v232 = vld [vmem:[#allocation5 + $0x378] sm:$0xff]
    %v233 = vld [vmem:[#allocation5 + $0x380] sm:$0xff]
    %v234 = vld [vmem:[#allocation5 + $0x388] sm:$0xff]
    %v235 = vld [vmem:[#allocation5 + $0x390] sm:$0xff]
    %v236 = vld [vmem:[#allocation5 + $0x398] sm:$0xff]
    %v237 = vld [vmem:[#allocation5 + $0x3a0] sm:$0xff]
    %v238 = vld [vmem:[#allocation5 + $0x3a8] sm:$0xff]
    %v239 = vld [vmem:[#allocation5 + $0x3b0] sm:$0xff]
    %v240 = vld [vmem:[#allocation5 + $0x3b8] sm:$0xff]
    %v241 = vld [vmem:[#allocation5 + $0x3c0] sm:$0xff]
    %v242 = vld [vmem:[#allocation5 + $0x3c8] sm:$0xff]
    %v243 = vld [vmem:[#allocation5 + $0x3d0] sm:$0xff]
    %v244 = vld [vmem:[#allocation5 + $0x3d8] sm:$0xff]
    %v245 = vld [vmem:[#allocation5 + $0x3e0] sm:$0xff]
    %v246 = vld [vmem:[#allocation5 + $0x3e8] sm:$0xff]
    %v247 = vld [vmem:[#allocation5 + $0x3f0] sm:$0xff]
    %v248 = vld [vmem:[#allocation5 + $0x3f8] sm:$0xff]
    %v249 = vld [vmem:[#allocation5 + $0x400] sm:$0xff]
    %v250 = vld [vmem:[#allocation5 + $0x408] sm:$0xff]
    %v251 = vld [vmem:[#allocation5 + $0x410] sm:$0xff]
    %v252 = vld [vmem:[#allocation5 + $0x418] sm:$0xff]
    %v253 = vld [vmem:[#allocation5 + $0x420] sm:$0xff]
    %v254 = vld [vmem:[#allocation5 + $0x428] sm:$0xff]
    %v255 = vld [vmem:[#allocation5 + $0x430] sm:$0xff]
    %v256 = vld [vmem:[#allocation5 + $0x438] sm:$0xff]
    %v257 = vld [vmem:[#allocation5 + $0x440] sm:$0xff]
    %v258 = vld [vmem:[#allocation5 + $0x448] sm:$0xff]
    %v259 = vld [vmem:[#allocation5 + $0x450] sm:$0xff]
    %v260 = vld [vmem:[#allocation5 + $0x458] sm:$0xff]
    %v261 = vld [vmem:[#allocation5 + $0x460] sm:$0xff]
    %v262 = vld [vmem:[#allocation5 + $0x468] sm:$0xff]
    %v263 = vld [vmem:[#allocation5 + $0x470] sm:$0xff]
    %v264 = vld [vmem:[#allocation5 + $0x478] sm:$0xff]
    %v265 = vld [vmem:[#allocation5 + $0x480] sm:$0xff]
    %v266 = vld [vmem:[#allocation5 + $0x488] sm:$0xff]
    %v267 = vld [vmem:[#allocation5 + $0x490] sm:$0xff]
    %v268 = vld [vmem:[#allocation5 + $0x498] sm:$0xff]
    %v269 = vld [vmem:[#allocation5 + $0x4a0] sm:$0xff]
    %v270 = vld [vmem:[#allocation5 + $0x4a8] sm:$0xff]
    %v271 = vld [vmem:[#allocation5 + $0x4b0] sm:$0xff]
    %v272 = vld [vmem:[#allocation5 + $0x4b8] sm:$0xff]
    %v273 = vld [vmem:[#allocation5 + $0x4c0] sm:$0xff]
    %v274 = vld [vmem:[#allocation5 + $0x4c8] sm:$0xff]
    %v275 = vld [vmem:[#allocation5 + $0x4d0] sm:$0xff]
    %v276 = vld [vmem:[#allocation5 + $0x4d8] sm:$0xff]
    %v277 = vld [vmem:[#allocation5 + $0x4e0] sm:$0xff]
    %v278 = vld [vmem:[#allocation5 + $0x4e8] sm:$0xff]
    %v279 = vld [vmem:[#allocation5 + $0x4f0] sm:$0xff]
    %v280 = vld [vmem:[#allocation5 + $0x4f8] sm:$0xff]
    %v281 = vld [vmem:[#allocation5 + $0x500] sm:$0xff]
    %v282 = vld [vmem:[#allocation5 + $0x508] sm:$0xff]
    %v283 = vld [vmem:[#allocation5 + $0x510] sm:$0xff]
    %v284 = vld [vmem:[#allocation5 + $0x518] sm:$0xff]
    %v285 = vld [vmem:[#allocation5 + $0x520] sm:$0xff]
    %v286 = vld [vmem:[#allocation5 + $0x528] sm:$0xff]
    %v287 = vld [vmem:[#allocation5 + $0x530] sm:$0xff]
    %v288 = vld [vmem:[#allocation5 + $0x538] sm:$0xff]
    %v289 = vld [vmem:[#allocation5 + $0x540] sm:$0xff]
    %v290 = vld [vmem:[#allocation5 + $0x548] sm:$0xff]
    %v291 = vld [vmem:[#allocation5 + $0x550] sm:$0xff]
    %v292 = vld [vmem:[#allocation5 + $0x558] sm:$0xff]
    %v293 = vld [vmem:[#allocation5 + $0x560] sm:$0xff]
    %v294 = vld [vmem:[#allocation5 + $0x568] sm:$0xff]
    %v295 = vld [vmem:[#allocation5 + $0x570] sm:$0xff]
    %v296 = vld [vmem:[#allocation5 + $0x578] sm:$0xff]
    %v297 = vld [vmem:[#allocation5 + $0x580] sm:$0xff]
    %v298 = vld [vmem:[#allocation5 + $0x588] sm:$0xff]
    %v299 = vld [vmem:[#allocation5 + $0x590] sm:$0xff]
    %v300 = vld [vmem:[#allocation5 + $0x598] sm:$0xff]
    %v301 = vld [vmem:[#allocation5 + $0x5a0] sm:$0xff]
    %v302 = vld [vmem:[#allocation5 + $0x5a8] sm:$0xff]
    %v303 = vld [vmem:[#allocation5 + $0x5b0] sm:$0xff]
    %v304 = vld [vmem:[#allocation5 + $0x5b8] sm:$0xff]
    %v305 = vld [vmem:[#allocation5 + $0x5c0] sm:$0xff]
    %v306 = vld [vmem:[#allocation5 + $0x5c8] sm:$0xff]
    %v307 = vld [vmem:[#allocation5 + $0x5d0] sm:$0xff]
    %v308 = vld [vmem:[#allocation5 + $0x5d8] sm:$0xff]
    %v309 = vld [vmem:[#allocation5 + $0x5e0] sm:$0xff]
    %v310 = vld [vmem:[#allocation5 + $0x5e8] sm:$0xff]
    %v311 = vld [vmem:[#allocation5 + $0x5f0] sm:$0xff]
    %v312 = vld [vmem:[#allocation5 + $0x5f8] sm:$0xff]
    %v313 = vld [vmem:[#allocation7] sm:$0xf]
    %v315 = vperm.slane %v313, 0
    %v316 = vperm.slane %v313, 1
    %v317 = vperm.slane %v313, 2
    %v318 = vperm.slane %v313, 3
    %v515 = vunpack.c.l.b16 %v121
    %v516 = vunpack.c.h.b16 %v121
    %v517 = vunpack.c.l.b16 %v122
    %v518 = vunpack.c.h.b16 %v122
    %v519 = vunpack.c.l.b16 %v123
    %v520 = vunpack.c.h.b16 %v123
    %v521 = vunpack.c.l.b16 %v124
    %v522 = vunpack.c.h.b16 %v124
    %v523 = vunpack.c.l.b16 %v125
    %v524 = vunpack.c.h.b16 %v125
    %v525 = vunpack.c.l.b16 %v126
    %v526 = vunpack.c.h.b16 %v126
    %v527 = vunpack.c.l.b16 %v127
    %v528 = vunpack.c.h.b16 %v127
    %v529 = vunpack.c.l.b16 %v128
    %v530 = vunpack.c.h.b16 %v128
    %v531 = vunpack.c.l.b16 %v129
    %v532 = vunpack.c.h.b16 %v129
    %v533 = vunpack.c.l.b16 %v130
    %v534 = vunpack.c.h.b16 %v130
    %v535 = vunpack.c.l.b16 %v131
    %v536 = vunpack.c.h.b16 %v131
    %v537 = vunpack.c.l.b16 %v132
    %v538 = vunpack.c.h.b16 %v132
    %v539 = vunpack.c.l.b16 %v133
    %v540 = vunpack.c.h.b16 %v133
    %v541 = vunpack.c.l.b16 %v134
    %v542 = vunpack.c.h.b16 %v134
    %v543 = vunpack.c.l.b16 %v135
    %v544 = vunpack.c.h.b16 %v135
    %v545 = vunpack.c.l.b16 %v136
    %v546 = vunpack.c.h.b16 %v136
    %v547 = vunpack.c.l.b16 %v137
    %v548 = vunpack.c.h.b16 %v137
    %v549 = vunpack.c.l.b16 %v138
    %v550 = vunpack.c.h.b16 %v138
    %v551 = vunpack.c.l.b16 %v139
    %v552 = vunpack.c.h.b16 %v139
    %v553 = vunpack.c.l.b16 %v140
    %v554 = vunpack.c.h.b16 %v140
    %v555 = vunpack.c.l.b16 %v141
    %v556 = vunpack.c.h.b16 %v141
    %v557 = vunpack.c.l.b16 %v142
    %v558 = vunpack.c.h.b16 %v142
    %v559 = vunpack.c.l.b16 %v143
    %v560 = vunpack.c.h.b16 %v143
    %v561 = vunpack.c.l.b16 %v144
    %v562 = vunpack.c.h.b16 %v144
    %v563 = vunpack.c.l.b16 %v145
    %v564 = vunpack.c.h.b16 %v145
    %v565 = vunpack.c.l.b16 %v146
    %v566 = vunpack.c.h.b16 %v146
    %v567 = vunpack.c.l.b16 %v147
    %v568 = vunpack.c.h.b16 %v147
    %v569 = vunpack.c.l.b16 %v148
    %v570 = vunpack.c.h.b16 %v148
    %v571 = vunpack.c.l.b16 %v149
    %v572 = vunpack.c.h.b16 %v149
    %v573 = vunpack.c.l.b16 %v150
    %v574 = vunpack.c.h.b16 %v150
    %v575 = vunpack.c.l.b16 %v151
    %v576 = vunpack.c.h.b16 %v151
    %v577 = vunpack.c.l.b16 %v152
    %v578 = vunpack.c.h.b16 %v152
    %v579 = vunpack.c.l.b16 %v153
    %v580 = vunpack.c.h.b16 %v153
    %v581 = vunpack.c.l.b16 %v154
    %v582 = vunpack.c.h.b16 %v154
    %v583 = vunpack.c.l.b16 %v155
    %v584 = vunpack.c.h.b16 %v155
    %v585 = vunpack.c.l.b16 %v156
    %v586 = vunpack.c.h.b16 %v156
    %v587 = vunpack.c.l.b16 %v157
    %v588 = vunpack.c.h.b16 %v157
    %v589 = vunpack.c.l.b16 %v158
    %v590 = vunpack.c.h.b16 %v158
    %v591 = vunpack.c.l.b16 %v159
    %v592 = vunpack.c.h.b16 %v159
    %v593 = vunpack.c.l.b16 %v160
    %v594 = vunpack.c.h.b16 %v160
    %v595 = vunpack.c.l.b16 %v161
    %v596 = vunpack.c.h.b16 %v161
    %v597 = vunpack.c.l.b16 %v162
    %v598 = vunpack.c.h.b16 %v162
    %v599 = vunpack.c.l.b16 %v163
    %v600 = vunpack.c.h.b16 %v163
    %v601 = vunpack.c.l.b16 %v164
    %v602 = vunpack.c.h.b16 %v164
    %v603 = vunpack.c.l.b16 %v165
    %v604 = vunpack.c.h.b16 %v165
    %v605 = vunpack.c.l.b16 %v166
    %v606 = vunpack.c.h.b16 %v166
    %v607 = vunpack.c.l.b16 %v167
    %v608 = vunpack.c.h.b16 %v167
    %v609 = vunpack.c.l.b16 %v168
    %v610 = vunpack.c.h.b16 %v168
    %v611 = vunpack.c.l.b16 %v169
    %v612 = vunpack.c.h.b16 %v169
    %v613 = vunpack.c.l.b16 %v170
    %v614 = vunpack.c.h.b16 %v170
    %v615 = vunpack.c.l.b16 %v171
    %v616 = vunpack.c.h.b16 %v171
    %v617 = vunpack.c.l.b16 %v172
    %v618 = vunpack.c.h.b16 %v172
    %v619 = vunpack.c.l.b16 %v173
    %v620 = vunpack.c.h.b16 %v173
    %v621 = vunpack.c.l.b16 %v174
    %v622 = vunpack.c.h.b16 %v174
    %v623 = vunpack.c.l.b16 %v175
    %v624 = vunpack.c.h.b16 %v175
    %v625 = vunpack.c.l.b16 %v176
    %v626 = vunpack.c.h.b16 %v176
    %v627 = vunpack.c.l.b16 %v177
    %v628 = vunpack.c.h.b16 %v177
    %v629 = vunpack.c.l.b16 %v178
    %v630 = vunpack.c.h.b16 %v178
    %v631 = vunpack.c.l.b16 %v179
    %v632 = vunpack.c.h.b16 %v179
    %v633 = vunpack.c.l.b16 %v180
    %v634 = vunpack.c.h.b16 %v180
    %v635 = vunpack.c.l.b16 %v181
    %v636 = vunpack.c.h.b16 %v181
    %v637 = vunpack.c.l.b16 %v182
    %v638 = vunpack.c.h.b16 %v182
    %v639 = vunpack.c.l.b16 %v183
    %v640 = vunpack.c.h.b16 %v183
    %v641 = vunpack.c.l.b16 %v184
    %v642 = vunpack.c.h.b16 %v184
    %v643 = vunpack.c.l.b16 %v185
    %v644 = vunpack.c.h.b16 %v185
    %v645 = vunpack.c.l.b16 %v186
    %v646 = vunpack.c.h.b16 %v186
    %v647 = vunpack.c.l.b16 %v187
    %v648 = vunpack.c.h.b16 %v187
    %v649 = vunpack.c.l.b16 %v188
    %v650 = vunpack.c.h.b16 %v188
    %v651 = vunpack.c.l.b16 %v189
    %v652 = vunpack.c.h.b16 %v189
    %v653 = vunpack.c.l.b16 %v190
    %v654 = vunpack.c.h.b16 %v190
    %v655 = vunpack.c.l.b16 %v191
    %v656 = vunpack.c.h.b16 %v191
    %v657 = vunpack.c.l.b16 %v192
    %v658 = vunpack.c.h.b16 %v192
    %v659 = vunpack.c.l.b16 %v193
    %v660 = vunpack.c.h.b16 %v193
    %v661 = vunpack.c.l.b16 %v194
    %v662 = vunpack.c.h.b16 %v194
    %v663 = vunpack.c.l.b16 %v195
    %v664 = vunpack.c.h.b16 %v195
    %v665 = vunpack.c.l.b16 %v196
    %v666 = vunpack.c.h.b16 %v196
    %v667 = vunpack.c.l.b16 %v197
    %v668 = vunpack.c.h.b16 %v197
    %v669 = vunpack.c.l.b16 %v198
    %v670 = vunpack.c.h.b16 %v198
    %v671 = vunpack.c.l.b16 %v199
    %v672 = vunpack.c.h.b16 %v199
    %v673 = vunpack.c.l.b16 %v200
    %v674 = vunpack.c.h.b16 %v200
    %v675 = vunpack.c.l.b16 %v201
    %v676 = vunpack.c.h.b16 %v201
    %v677 = vunpack.c.l.b16 %v202
    %v678 = vunpack.c.h.b16 %v202
    %v679 = vunpack.c.l.b16 %v203
    %v680 = vunpack.c.h.b16 %v203
    %v681 = vunpack.c.l.b16 %v204
    %v682 = vunpack.c.h.b16 %v204
    %v683 = vunpack.c.l.b16 %v205
    %v684 = vunpack.c.h.b16 %v205
    %v685 = vunpack.c.l.b16 %v206
    %v686 = vunpack.c.h.b16 %v206
    %v687 = vunpack.c.l.b16 %v207
    %v688 = vunpack.c.h.b16 %v207
    %v689 = vunpack.c.l.b16 %v208
    %v690 = vunpack.c.h.b16 %v208
    %v691 = vunpack.c.l.b16 %v209
    %v692 = vunpack.c.h.b16 %v209
    %v693 = vunpack.c.l.b16 %v210
    %v694 = vunpack.c.h.b16 %v210
    %v695 = vunpack.c.l.b16 %v211
    %v696 = vunpack.c.h.b16 %v211
    %v697 = vunpack.c.l.b16 %v212
    %v698 = vunpack.c.h.b16 %v212
    %v699 = vunpack.c.l.b16 %v213
    %v700 = vunpack.c.h.b16 %v213
    %v701 = vunpack.c.l.b16 %v214
    %v702 = vunpack.c.h.b16 %v214
    %v703 = vunpack.c.l.b16 %v215
    %v704 = vunpack.c.h.b16 %v215
    %v705 = vunpack.c.l.b16 %v216
    %v706 = vunpack.c.h.b16 %v216
    %v707 = vunpack.c.l.b16 %v217
    %v708 = vunpack.c.h.b16 %v217
    %v709 = vunpack.c.l.b16 %v218
    %v710 = vunpack.c.h.b16 %v218
    %v711 = vunpack.c.l.b16 %v219
    %v712 = vunpack.c.h.b16 %v219
    %v713 = vunpack.c.l.b16 %v220
    %v714 = vunpack.c.h.b16 %v220
    %v715 = vunpack.c.l.b16 %v221
    %v716 = vunpack.c.h.b16 %v221
    %v717 = vunpack.c.l.b16 %v222
    %v718 = vunpack.c.h.b16 %v222
    %v719 = vunpack.c.l.b16 %v223
    %v720 = vunpack.c.h.b16 %v223
    %v721 = vunpack.c.l.b16 %v224
    %v722 = vunpack.c.h.b16 %v224
    %v723 = vunpack.c.l.b16 %v225
    %v724 = vunpack.c.h.b16 %v225
    %v725 = vunpack.c.l.b16 %v226
    %v726 = vunpack.c.h.b16 %v226
    %v727 = vunpack.c.l.b16 %v227
    %v728 = vunpack.c.h.b16 %v227
    %v729 = vunpack.c.l.b16 %v228
    %v730 = vunpack.c.h.b16 %v228
    %v731 = vunpack.c.l.b16 %v229
    %v732 = vunpack.c.h.b16 %v229
    %v733 = vunpack.c.l.b16 %v230
    %v734 = vunpack.c.h.b16 %v230
    %v735 = vunpack.c.l.b16 %v231
    %v736 = vunpack.c.h.b16 %v231
    %v737 = vunpack.c.l.b16 %v232
    %v738 = vunpack.c.h.b16 %v232
    %v739 = vunpack.c.l.b16 %v233
    %v740 = vunpack.c.h.b16 %v233
    %v741 = vunpack.c.l.b16 %v234
    %v742 = vunpack.c.h.b16 %v234
    %v743 = vunpack.c.l.b16 %v235
    %v744 = vunpack.c.h.b16 %v235
    %v745 = vunpack.c.l.b16 %v236
    %v746 = vunpack.c.h.b16 %v236
    %v747 = vunpack.c.l.b16 %v237
    %v748 = vunpack.c.h.b16 %v237
    %v749 = vunpack.c.l.b16 %v238
    %v750 = vunpack.c.h.b16 %v238
    %v751 = vunpack.c.l.b16 %v239
    %v752 = vunpack.c.h.b16 %v239
    %v753 = vunpack.c.l.b16 %v240
    %v754 = vunpack.c.h.b16 %v240
    %v755 = vunpack.c.l.b16 %v241
    %v756 = vunpack.c.h.b16 %v241
    %v757 = vunpack.c.l.b16 %v242
    %v758 = vunpack.c.h.b16 %v242
    %v759 = vunpack.c.l.b16 %v243
    %v760 = vunpack.c.h.b16 %v243
    %v761 = vunpack.c.l.b16 %v244
    %v762 = vunpack.c.h.b16 %v244
    %v763 = vunpack.c.l.b16 %v245
    %v764 = vunpack.c.h.b16 %v245
    %v765 = vunpack.c.l.b16 %v246
    %v766 = vunpack.c.h.b16 %v246
    %v767 = vunpack.c.l.b16 %v247
    %v768 = vunpack.c.h.b16 %v247
    %v769 = vunpack.c.l.b16 %v248
    %v770 = vunpack.c.h.b16 %v248
    %v771 = vunpack.c.l.b16 %v249
    %v772 = vunpack.c.h.b16 %v249
    %v773 = vunpack.c.l.b16 %v250
    %v774 = vunpack.c.h.b16 %v250
    %v775 = vunpack.c.l.b16 %v251
    %v776 = vunpack.c.h.b16 %v251
    %v777 = vunpack.c.l.b16 %v252
    %v778 = vunpack.c.h.b16 %v252
    %v779 = vunpack.c.l.b16 %v253
    %v780 = vunpack.c.h.b16 %v253
    %v781 = vunpack.c.l.b16 %v254
    %v782 = vunpack.c.h.b16 %v254
    %v783 = vunpack.c.l.b16 %v255
    %v784 = vunpack.c.h.b16 %v255
    %v785 = vunpack.c.l.b16 %v256
    %v786 = vunpack.c.h.b16 %v256
    %v787 = vunpack.c.l.b16 %v257
    %v788 = vunpack.c.h.b16 %v257
    %v789 = vunpack.c.l.b16 %v258
    %v790 = vunpack.c.h.b16 %v258
    %v791 = vunpack.c.l.b16 %v259
    %v792 = vunpack.c.h.b16 %v259
    %v793 = vunpack.c.l.b16 %v260
    %v794 = vunpack.c.h.b16 %v260
    %v795 = vunpack.c.l.b16 %v261
    %v796 = vunpack.c.h.b16 %v261
    %v797 = vunpack.c.l.b16 %v262
    %v798 = vunpack.c.h.b16 %v262
    %v799 = vunpack.c.l.b16 %v263
    %v800 = vunpack.c.h.b16 %v263
    %v801 = vunpack.c.l.b16 %v264
    %v802 = vunpack.c.h.b16 %v264
    %v803 = vunpack.c.l.b16 %v265
    %v804 = vunpack.c.h.b16 %v265
    %v805 = vunpack.c.l.b16 %v266
    %v806 = vunpack.c.h.b16 %v266
    %v807 = vunpack.c.l.b16 %v267
    %v808 = vunpack.c.h.b16 %v267
    %v809 = vunpack.c.l.b16 %v268
    %v810 = vunpack.c.h.b16 %v268
    %v811 = vunpack.c.l.b16 %v269
    %v812 = vunpack.c.h.b16 %v269
    %v813 = vunpack.c.l.b16 %v270
    %v814 = vunpack.c.h.b16 %v270
    %v815 = vunpack.c.l.b16 %v271
    %v816 = vunpack.c.h.b16 %v271
    %v817 = vunpack.c.l.b16 %v272
    %v818 = vunpack.c.h.b16 %v272
    %v819 = vunpack.c.l.b16 %v273
    %v820 = vunpack.c.h.b16 %v273
    %v821 = vunpack.c.l.b16 %v274
    %v822 = vunpack.c.h.b16 %v274
    %v823 = vunpack.c.l.b16 %v275
    %v824 = vunpack.c.h.b16 %v275
    %v825 = vunpack.c.l.b16 %v276
    %v826 = vunpack.c.h.b16 %v276
    %v827 = vunpack.c.l.b16 %v277
    %v828 = vunpack.c.h.b16 %v277
    %v829 = vunpack.c.l.b16 %v278
    %v830 = vunpack.c.h.b16 %v278
    %v831 = vunpack.c.l.b16 %v279
    %v832 = vunpack.c.h.b16 %v279
    %v833 = vunpack.c.l.b16 %v280
    %v834 = vunpack.c.h.b16 %v280
    %v835 = vunpack.c.l.b16 %v281
    %v836 = vunpack.c.h.b16 %v281
    %v837 = vunpack.c.l.b16 %v282
    %v838 = vunpack.c.h.b16 %v282
    %v839 = vunpack.c.l.b16 %v283
    %v840 = vunpack.c.h.b16 %v283
    %v841 = vunpack.c.l.b16 %v284
    %v842 = vunpack.c.h.b16 %v284
    %v843 = vunpack.c.l.b16 %v285
    %v844 = vunpack.c.h.b16 %v285
    %v845 = vunpack.c.l.b16 %v286
    %v846 = vunpack.c.h.b16 %v286
    %v847 = vunpack.c.l.b16 %v287
    %v848 = vunpack.c.h.b16 %v287
    %v849 = vunpack.c.l.b16 %v288
    %v850 = vunpack.c.h.b16 %v288
    %v851 = vunpack.c.l.b16 %v289
    %v852 = vunpack.c.h.b16 %v289
    %v853 = vunpack.c.l.b16 %v290
    %v854 = vunpack.c.h.b16 %v290
    %v855 = vunpack.c.l.b16 %v291
    %v856 = vunpack.c.h.b16 %v291
    %v857 = vunpack.c.l.b16 %v292
    %v858 = vunpack.c.h.b16 %v292
    %v859 = vunpack.c.l.b16 %v293
    %v860 = vunpack.c.h.b16 %v293
    %v861 = vunpack.c.l.b16 %v294
    %v862 = vunpack.c.h.b16 %v294
    %v863 = vunpack.c.l.b16 %v295
    %v864 = vunpack.c.h.b16 %v295
    %v865 = vunpack.c.l.b16 %v296
    %v866 = vunpack.c.h.b16 %v296
    %v867 = vunpack.c.l.b16 %v297
    %v868 = vunpack.c.h.b16 %v297
    %v869 = vunpack.c.l.b16 %v298
    %v870 = vunpack.c.h.b16 %v298
    %v871 = vunpack.c.l.b16 %v299
    %v872 = vunpack.c.h.b16 %v299
    %v873 = vunpack.c.l.b16 %v300
    %v874 = vunpack.c.h.b16 %v300
    %v875 = vunpack.c.l.b16 %v301
    %v876 = vunpack.c.h.b16 %v301
    %v877 = vunpack.c.l.b16 %v302
    %v878 = vunpack.c.h.b16 %v302
    %v879 = vunpack.c.l.b16 %v303
    %v880 = vunpack.c.h.b16 %v303
    %v881 = vunpack.c.l.b16 %v304
    %v882 = vunpack.c.h.b16 %v304
    %v883 = vunpack.c.l.b16 %v305
    %v884 = vunpack.c.h.b16 %v305
    %v885 = vunpack.c.l.b16 %v306
    %v886 = vunpack.c.h.b16 %v306
    %v887 = vunpack.c.l.b16 %v307
    %v888 = vunpack.c.h.b16 %v307
    %v889 = vunpack.c.l.b16 %v308
    %v890 = vunpack.c.h.b16 %v308
    %v891 = vunpack.c.l.b16 %v309
    %v892 = vunpack.c.h.b16 %v309
    %v893 = vunpack.c.l.b16 %v310
    %v894 = vunpack.c.h.b16 %v310
    %v895 = vunpack.c.l.b16 %v311
    %v896 = vunpack.c.h.b16 %v311
    %v897 = vunpack.c.l.b16 %v312
    %v898 = vunpack.c.h.b16 %v312
    %v899 = vpack.c.b16 %v519, %v515
    %v900 = vpack.c.b16 %v520, %v516
    %v901 = vpack.c.b16 %v521, %v517
    %v902 = vpack.c.b16 %v522, %v518
    %v903 = vpack.c.b16 %v527, %v523
    %v904 = vpack.c.b16 %v528, %v524
    %v905 = vpack.c.b16 %v529, %v525
    %v906 = vpack.c.b16 %v530, %v526
    %v907 = vpack.c.b16 %v535, %v531
    %v908 = vpack.c.b16 %v536, %v532
    %v909 = vpack.c.b16 %v537, %v533
    %v910 = vpack.c.b16 %v538, %v534
    %v911 = vpack.c.b16 %v543, %v539
    %v912 = vpack.c.b16 %v544, %v540
    %v913 = vpack.c.b16 %v545, %v541
    %v914 = vpack.c.b16 %v546, %v542
    %v915 = vpack.c.b16 %v551, %v547
    %v916 = vpack.c.b16 %v552, %v548
    %v917 = vpack.c.b16 %v553, %v549
    %v918 = vpack.c.b16 %v554, %v550
    %v919 = vpack.c.b16 %v559, %v555
    %v920 = vpack.c.b16 %v560, %v556
    %v921 = vpack.c.b16 %v561, %v557
    %v922 = vpack.c.b16 %v562, %v558
    %v923 = vpack.c.b16 %v567, %v563
    %v924 = vpack.c.b16 %v568, %v564
    %v925 = vpack.c.b16 %v569, %v565
    %v926 = vpack.c.b16 %v570, %v566
    %v927 = vpack.c.b16 %v575, %v571
    %v928 = vpack.c.b16 %v576, %v572
    %v929 = vpack.c.b16 %v577, %v573
    %v930 = vpack.c.b16 %v578, %v574
    %v931 = vpack.c.b16 %v583, %v579
    %v932 = vpack.c.b16 %v584, %v580
    %v933 = vpack.c.b16 %v585, %v581
    %v934 = vpack.c.b16 %v586, %v582
    %v935 = vpack.c.b16 %v591, %v587
    %v936 = vpack.c.b16 %v592, %v588
    %v937 = vpack.c.b16 %v593, %v589
    %v938 = vpack.c.b16 %v594, %v590
    %v939 = vpack.c.b16 %v599, %v595
    %v940 = vpack.c.b16 %v600, %v596
    %v941 = vpack.c.b16 %v601, %v597
    %v942 = vpack.c.b16 %v602, %v598
    %v943 = vpack.c.b16 %v607, %v603
    %v944 = vpack.c.b16 %v608, %v604
    %v945 = vpack.c.b16 %v609, %v605
    %v946 = vpack.c.b16 %v610, %v606
    %v947 = vpack.c.b16 %v615, %v611
    %v948 = vpack.c.b16 %v616, %v612
    %v949 = vpack.c.b16 %v617, %v613
    %v950 = vpack.c.b16 %v618, %v614
    %v951 = vpack.c.b16 %v623, %v619
    %v952 = vpack.c.b16 %v624, %v620
    %v953 = vpack.c.b16 %v625, %v621
    %v954 = vpack.c.b16 %v626, %v622
    %v955 = vpack.c.b16 %v631, %v627
    %v956 = vpack.c.b16 %v632, %v628
    %v957 = vpack.c.b16 %v633, %v629
    %v958 = vpack.c.b16 %v634, %v630
    %v959 = vpack.c.b16 %v639, %v635
    %v960 = vpack.c.b16 %v640, %v636
    %v961 = vpack.c.b16 %v641, %v637
    %v962 = vpack.c.b16 %v642, %v638
    %v963 = vpack.c.b16 %v647, %v643
    %v964 = vpack.c.b16 %v648, %v644
    %v965 = vpack.c.b16 %v649, %v645
    %v966 = vpack.c.b16 %v650, %v646
    %v967 = vpack.c.b16 %v655, %v651
    %v968 = vpack.c.b16 %v656, %v652
    %v969 = vpack.c.b16 %v657, %v653
    %v970 = vpack.c.b16 %v658, %v654
    %v971 = vpack.c.b16 %v663, %v659
    %v972 = vpack.c.b16 %v664, %v660
    %v973 = vpack.c.b16 %v665, %v661
    %v974 = vpack.c.b16 %v666, %v662
    %v975 = vpack.c.b16 %v671, %v667
    %v976 = vpack.c.b16 %v672, %v668
    %v977 = vpack.c.b16 %v673, %v669
    %v978 = vpack.c.b16 %v674, %v670
    %v979 = vpack.c.b16 %v679, %v675
    %v980 = vpack.c.b16 %v680, %v676
    %v981 = vpack.c.b16 %v681, %v677
    %v982 = vpack.c.b16 %v682, %v678
    %v983 = vpack.c.b16 %v687, %v683
    %v984 = vpack.c.b16 %v688, %v684
    %v985 = vpack.c.b16 %v689, %v685
    %v986 = vpack.c.b16 %v690, %v686
    %v987 = vpack.c.b16 %v695, %v691
    %v988 = vpack.c.b16 %v696, %v692
    %v989 = vpack.c.b16 %v697, %v693
    %v990 = vpack.c.b16 %v698, %v694
    %v991 = vpack.c.b16 %v703, %v699
    %v992 = vpack.c.b16 %v704, %v700
    %v993 = vpack.c.b16 %v705, %v701
    %v994 = vpack.c.b16 %v706, %v702
    %v995 = vpack.c.b16 %v711, %v707
    %v996 = vpack.c.b16 %v712, %v708
    %v997 = vpack.c.b16 %v713, %v709
    %v998 = vpack.c.b16 %v714, %v710
    %v999 = vpack.c.b16 %v719, %v715
    %v1000 = vpack.c.b16 %v720, %v716
    %v1001 = vpack.c.b16 %v721, %v717
    %v1002 = vpack.c.b16 %v722, %v718
    %v1003 = vpack.c.b16 %v727, %v723
    %v1004 = vpack.c.b16 %v728, %v724
    %v1005 = vpack.c.b16 %v729, %v725
    %v1006 = vpack.c.b16 %v730, %v726
    %v1007 = vpack.c.b16 %v735, %v731
    %v1008 = vpack.c.b16 %v736, %v732
    %v1009 = vpack.c.b16 %v737, %v733
    %v1010 = vpack.c.b16 %v738, %v734
    %v1011 = vpack.c.b16 %v743, %v739
    %v1012 = vpack.c.b16 %v744, %v740
    %v1013 = vpack.c.b16 %v745, %v741
    %v1014 = vpack.c.b16 %v746, %v742
    %v1015 = vpack.c.b16 %v751, %v747
    %v1016 = vpack.c.b16 %v752, %v748
    %v1017 = vpack.c.b16 %v753, %v749
    %v1018 = vpack.c.b16 %v754, %v750
    %v1019 = vpack.c.b16 %v759, %v755
    %v1020 = vpack.c.b16 %v760, %v756
    %v1021 = vpack.c.b16 %v761, %v757
    %v1022 = vpack.c.b16 %v762, %v758
    %v1023 = vpack.c.b16 %v767, %v763
    %v1024 = vpack.c.b16 %v768, %v764
    %v1025 = vpack.c.b16 %v769, %v765
    %v1026 = vpack.c.b16 %v770, %v766
    %v1027 = vpack.c.b16 %v775, %v771
    %v1028 = vpack.c.b16 %v776, %v772
    %v1029 = vpack.c.b16 %v777, %v773
    %v1030 = vpack.c.b16 %v778, %v774
    %v1031 = vpack.c.b16 %v783, %v779
    %v1032 = vpack.c.b16 %v784, %v780
    %v1033 = vpack.c.b16 %v785, %v781
    %v1034 = vpack.c.b16 %v786, %v782
    %v1035 = vpack.c.b16 %v791, %v787
    %v1036 = vpack.c.b16 %v792, %v788
    %v1037 = vpack.c.b16 %v793, %v789
    %v1038 = vpack.c.b16 %v794, %v790
    %v1039 = vpack.c.b16 %v799, %v795
    %v1040 = vpack.c.b16 %v800, %v796
    %v1041 = vpack.c.b16 %v801, %v797
    %v1042 = vpack.c.b16 %v802, %v798
    %v1043 = vpack.c.b16 %v807, %v803
    %v1044 = vpack.c.b16 %v808, %v804
    %v1045 = vpack.c.b16 %v809, %v805
    %v1046 = vpack.c.b16 %v810, %v806
    %v1047 = vpack.c.b16 %v815, %v811
    %v1048 = vpack.c.b16 %v816, %v812
    %v1049 = vpack.c.b16 %v817, %v813
    %v1050 = vpack.c.b16 %v818, %v814
    %v1051 = vpack.c.b16 %v823, %v819
    %v1052 = vpack.c.b16 %v824, %v820
    %v1053 = vpack.c.b16 %v825, %v821
    %v1054 = vpack.c.b16 %v826, %v822
    %v1055 = vpack.c.b16 %v831, %v827
    %v1056 = vpack.c.b16 %v832, %v828
    %v1057 = vpack.c.b16 %v833, %v829
    %v1058 = vpack.c.b16 %v834, %v830
    %v1059 = vpack.c.b16 %v839, %v835
    %v1060 = vpack.c.b16 %v840, %v836
    %v1061 = vpack.c.b16 %v841, %v837
    %v1062 = vpack.c.b16 %v842, %v838
    %v1063 = vpack.c.b16 %v847, %v843
    %v1064 = vpack.c.b16 %v848, %v844
    %v1065 = vpack.c.b16 %v849, %v845
    %v1066 = vpack.c.b16 %v850, %v846
    %v1067 = vpack.c.b16 %v855, %v851
    %v1068 = vpack.c.b16 %v856, %v852
    %v1069 = vpack.c.b16 %v857, %v853
    %v1070 = vpack.c.b16 %v858, %v854
    %v1071 = vpack.c.b16 %v863, %v859
    %v1072 = vpack.c.b16 %v864, %v860
    %v1073 = vpack.c.b16 %v865, %v861
    %v1074 = vpack.c.b16 %v866, %v862
    %v1075 = vpack.c.b16 %v871, %v867
    %v1076 = vpack.c.b16 %v872, %v868
    %v1077 = vpack.c.b16 %v873, %v869
    %v1078 = vpack.c.b16 %v874, %v870
    %v1079 = vpack.c.b16 %v879, %v875
    %v1080 = vpack.c.b16 %v880, %v876
    %v1081 = vpack.c.b16 %v881, %v877
    %v1082 = vpack.c.b16 %v882, %v878
    %v1083 = vpack.c.b16 %v887, %v883
    %v1084 = vpack.c.b16 %v888, %v884
    %v1085 = vpack.c.b16 %v889, %v885
    %v1086 = vpack.c.b16 %v890, %v886
    %v1087 = vpack.c.b16 %v895, %v891
    %v1088 = vpack.c.b16 %v896, %v892
    %v1089 = vpack.c.b16 %v897, %v893
    %v1090 = vpack.c.b16 %v898, %v894
    %1283 = vmatpush.bf16.msra.mxu0 %v927
    %1284 = vmatpush.bf16.msra.mxu0 %v923
    %1285 = vmatpush.bf16.msra.mxu0 %v919
    %1286 = vmatpush.bf16.msra.mxu0 %v915
    %1287 = vmatpush.bf16.msra.mxu0 %v911
    %1288 = vmatpush.bf16.msra.mxu0 %v907
    %1289 = vmatpush.bf16.msra.mxu0 %v903
    %1290 = vmatpush.bf16.msra.mxu0 %v899
    %1291 = vmatmul.bf16.gmra.mxu0 %v109
    %v1292 = vpop.f32.mrf.mxu0
    %v1293 = vadd.f32 %v315, %v1292
    %v1294 = vpop.f32.mrf.mxu0
    %v1295 = vadd.f32 %v315, %v1294
    %1296 = vmatmul.bf16.gmra.mxu0 %v115
    %v1297 = vpop.f32.mrf.mxu0
    %v1298 = vadd.f32 %v315, %v1297
    %v1299 = vpop.f32.mrf.mxu0
    %v1300 = vadd.f32 %v315, %v1299
    %1301 = vdwg.mxu0
    %1302 = vmatpush.bf16.msra.mxu0 %v959
    %1303 = vmatpush.bf16.msra.mxu0 %v955
    %1304 = vmatpush.bf16.msra.mxu0 %v951
    %1305 = vmatpush.bf16.msra.mxu0 %v947
    %1306 = vmatpush.bf16.msra.mxu0 %v943
    %1307 = vmatpush.bf16.msra.mxu0 %v939
    %1308 = vmatpush.bf16.msra.mxu0 %v935
    %1309 = vmatpush.bf16.msra.mxu0 %v931
    %1310 = vmatmul.bf16.gmra.mxu0 %v110
    %v1311 = vpop.f32.mrf.mxu0
    %v1312 = vadd.f32 %v1293, %v1311
    %v1313 = vpop.f32.mrf.mxu0
    %v1314 = vadd.f32 %v1295, %v1313
    %1315 = vmatmul.bf16.gmra.mxu0 %v116
    %v1316 = vpop.f32.mrf.mxu0
    %v1317 = vadd.f32 %v1298, %v1316
    %v1318 = vpop.f32.mrf.mxu0
    %v1319 = vadd.f32 %v1300, %v1318
    %1320 = vdwg.mxu0
    %1321 = vmatpush.bf16.msra.mxu0 %v991
    %1322 = vmatpush.bf16.msra.mxu0 %v987
    %1323 = vmatpush.bf16.msra.mxu0 %v983
    %1324 = vmatpush.bf16.msra.mxu0 %v979
    %1325 = vmatpush.bf16.msra.mxu0 %v975
    %1326 = vmatpush.bf16.msra.mxu0 %v971
    %1327 = vmatpush.bf16.msra.mxu0 %v967
    %1328 = vmatpush.bf16.msra.mxu0 %v963
    %1329 = vmatmul.bf16.gmra.mxu0 %v111
    %v1330 = vpop.f32.mrf.mxu0
    %v1331 = vadd.f32 %v1312, %v1330
    %v1332 = vpop.f32.mrf.mxu0
    %v1333 = vadd.f32 %v1314, %v1332
    %1334 = vmatmul.bf16.gmra.mxu0 %v117
    %v1335 = vpop.f32.mrf.mxu0
    %v1336 = vadd.f32 %v1317, %v1335
    %v1337 = vpop.f32.mrf.mxu0
    %v1338 = vadd.f32 %v1319, %v1337
    %1339 = vdwg.mxu0
    %1340 = vmatpush.bf16.msra.mxu0 %v1023
    %1341 = vmatpush.bf16.msra.mxu0 %v1019
    %1342 = vmatpush.bf16.msra.mxu0 %v1015
    %1343 = vmatpush.bf16.msra.mxu0 %v1011
    %1344 = vmatpush.bf16.msra.mxu0 %v1007
    %1345 = vmatpush.bf16.msra.mxu0 %v1003
    %1346 = vmatpush.bf16.msra.mxu0 %v999
    %1347 = vmatpush.bf16.msra.mxu0 %v995
    %1348 = vmatmul.bf16.gmra.mxu0 %v112
    %v1349 = vpop.f32.mrf.mxu0
    %v1350 = vadd.f32 %v1331, %v1349
    %v1351 = vpop.f32.mrf.mxu0
    %v1352 = vadd.f32 %v1333, %v1351
    %1353 = vmatmul.bf16.gmra.mxu0 %v118
    %v1354 = vpop.f32.mrf.mxu0
    %v1355 = vadd.f32 %v1336, %v1354
    %v1356 = vpop.f32.mrf.mxu0
    %v1357 = vadd.f32 %v1338, %v1356
    %1358 = vdwg.mxu0
    %1359 = vmatpush.bf16.msra.mxu0 %v1055
    %1360 = vmatpush.bf16.msra.mxu0 %v1051
    %1361 = vmatpush.bf16.msra.mxu0 %v1047
    %1362 = vmatpush.bf16.msra.mxu0 %v1043
    %1363 = vmatpush.bf16.msra.mxu0 %v1039
    %1364 = vmatpush.bf16.msra.mxu0 %v1035
    %1365 = vmatpush.bf16.msra.mxu0 %v1031
    %1366 = vmatpush.bf16.msra.mxu0 %v1027
    %1367 = vmatmul.bf16.gmra.mxu0 %v113
    %v1368 = vpop.f32.mrf.mxu0
    %v1369 = vadd.f32 %v1350, %v1368
    %v1370 = vpop.f32.mrf.mxu0
    %v1371 = vadd.f32 %v1352, %v1370
    %1372 = vmatmul.bf16.gmra.mxu0 %v119
    %v1373 = vpop.f32.mrf.mxu0
    %v1374 = vadd.f32 %v1355, %v1373
    %v1375 = vpop.f32.mrf.mxu0
    %v1376 = vadd.f32 %v1357, %v1375
    %1377 = vdwg.mxu0
    %1378 = vmatpush.bf16.msra.mxu0 %v1087
    %1379 = vmatpush.bf16.msra.mxu0 %v1083
    %1380 = vmatpush.bf16.msra.mxu0 %v1079
    %1381 = vmatpush.bf16.msra.mxu0 %v1075
    %1382 = vmatpush.bf16.msra.mxu0 %v1071
    %1383 = vmatpush.bf16.msra.mxu0 %v1067
    %1384 = vmatpush.bf16.msra.mxu0 %v1063
    %1385 = vmatpush.bf16.msra.mxu0 %v1059
    %1386 = vmatmul.bf16.gmra.mxu0 %v114
    %v1387 = vpop.f32.mrf.mxu0
    %v1388 = vadd.f32 %v1369, %v1387
    %v1389 = vpop.f32.mrf.mxu0
    %v1390 = vadd.f32 %v1371, %v1389
    %1391 = vmatmul.bf16.gmra.mxu0 %v120
    %v1392 = vpop.f32.mrf.mxu0
    %v1393 = vadd.f32 %v1374, %v1392
    %v1394 = vpop.f32.mrf.mxu0
    %v1395 = vadd.f32 %v1376, %v1394
    %1396 = vdwg.mxu0
    %1397 = vmatpush.bf16.msra.mxu0 %v928
    %1398 = vmatpush.bf16.msra.mxu0 %v924
    %1399 = vmatpush.bf16.msra.mxu0 %v920
    %1400 = vmatpush.bf16.msra.mxu0 %v916
    %1401 = vmatpush.bf16.msra.mxu0 %v912
    %1402 = vmatpush.bf16.msra.mxu0 %v908
    %1403 = vmatpush.bf16.msra.mxu0 %v904
    %1404 = vmatpush.bf16.msra.mxu0 %v900
    %1405 = vmatmul.bf16.gmra.mxu0 %v109
    %v1406 = vpop.f32.mrf.mxu0
    %v1407 = vadd.f32 %v316, %v1406
    %v1408 = vpop.f32.mrf.mxu0
    %v1409 = vadd.f32 %v316, %v1408
    %1410 = vmatmul.bf16.gmra.mxu0 %v115
    %v1411 = vpop.f32.mrf.mxu0
    %v1412 = vadd.f32 %v316, %v1411
    %v1413 = vpop.f32.mrf.mxu0
    %v1414 = vadd.f32 %v316, %v1413
    %1415 = vdwg.mxu0
    %1416 = vmatpush.bf16.msra.mxu0 %v960
    %1417 = vmatpush.bf16.msra.mxu0 %v956
    %1418 = vmatpush.bf16.msra.mxu0 %v952
    %1419 = vmatpush.bf16.msra.mxu0 %v948
    %1420 = vmatpush.bf16.msra.mxu0 %v944
    %1421 = vmatpush.bf16.msra.mxu0 %v940
    %1422 = vmatpush.bf16.msra.mxu0 %v936
    %1423 = vmatpush.bf16.msra.mxu0 %v932
    %1424 = vmatmul.bf16.gmra.mxu0 %v110
    %v1425 = vpop.f32.mrf.mxu0
    %v1426 = vadd.f32 %v1407, %v1425
    %v1427 = vpop.f32.mrf.mxu0
    %v1428 = vadd.f32 %v1409, %v1427
    %1429 = vmatmul.bf16.gmra.mxu0 %v116
    %v1430 = vpop.f32.mrf.mxu0
    %v1431 = vadd.f32 %v1412, %v1430
    %v1432 = vpop.f32.mrf.mxu0
    %v1433 = vadd.f32 %v1414, %v1432
    %1434 = vdwg.mxu0
    %1435 = vmatpush.bf16.msra.mxu0 %v992
    %1436 = vmatpush.bf16.msra.mxu0 %v988
    %1437 = vmatpush.bf16.msra.mxu0 %v984
    %1438 = vmatpush.bf16.msra.mxu0 %v980
    %1439 = vmatpush.bf16.msra.mxu0 %v976
    %1440 = vmatpush.bf16.msra.mxu0 %v972
    %1441 = vmatpush.bf16.msra.mxu0 %v968
    %1442 = vmatpush.bf16.msra.mxu0 %v964
    %1443 = vmatmul.bf16.gmra.mxu0 %v111
    %v1444 = vpop.f32.mrf.mxu0
    %v1445 = vadd.f32 %v1426, %v1444
    %v1446 = vpop.f32.mrf.mxu0
    %v1447 = vadd.f32 %v1428, %v1446
    %1448 = vmatmul.bf16.gmra.mxu0 %v117
    %v1449 = vpop.f32.mrf.mxu0
    %v1450 = vadd.f32 %v1431, %v1449
    %v1451 = vpop.f32.mrf.mxu0
    %v1452 = vadd.f32 %v1433, %v1451
    %1453 = vdwg.mxu0
    %1454 = vmatpush.bf16.msra.mxu0 %v1024
    %1455 = vmatpush.bf16.msra.mxu0 %v1020
    %1456 = vmatpush.bf16.msra.mxu0 %v1016
    %1457 = vmatpush.bf16.msra.mxu0 %v1012
    %1458 = vmatpush.bf16.msra.mxu0 %v1008
    %1459 = vmatpush.bf16.msra.mxu0 %v1004
    %1460 = vmatpush.bf16.msra.mxu0 %v1000
    %1461 = vmatpush.bf16.msra.mxu0 %v996
    %1462 = vmatmul.bf16.gmra.mxu0 %v112
    %v1463 = vpop.f32.mrf.mxu0
    %v1464 = vadd.f32 %v1445, %v1463
    %v1465 = vpop.f32.mrf.mxu0
    %v1466 = vadd.f32 %v1447, %v1465
    %1467 = vmatmul.bf16.gmra.mxu0 %v118
    %v1468 = vpop.f32.mrf.mxu0
    %v1469 = vadd.f32 %v1450, %v1468
    %v1470 = vpop.f32.mrf.mxu0
    %v1471 = vadd.f32 %v1452, %v1470
    %1472 = vdwg.mxu0
    %1473 = vmatpush.bf16.msra.mxu0 %v1056
    %1474 = vmatpush.bf16.msra.mxu0 %v1052
    %1475 = vmatpush.bf16.msra.mxu0 %v1048
    %1476 = vmatpush.bf16.msra.mxu0 %v1044
    %1477 = vmatpush.bf16.msra.mxu0 %v1040
    %1478 = vmatpush.bf16.msra.mxu0 %v1036
    %1479 = vmatpush.bf16.msra.mxu0 %v1032
    %1480 = vmatpush.bf16.msra.mxu0 %v1028
    %1481 = vmatmul.bf16.gmra.mxu0 %v113
    %v1482 = vpop.f32.mrf.mxu0
    %v1483 = vadd.f32 %v1464, %v1482
    %v1484 = vpop.f32.mrf.mxu0
    %v1485 = vadd.f32 %v1466, %v1484
    %1486 = vmatmul.bf16.gmra.mxu0 %v119
    %v1487 = vpop.f32.mrf.mxu0
    %v1488 = vadd.f32 %v1469, %v1487
    %v1489 = vpop.f32.mrf.mxu0
    %v1490 = vadd.f32 %v1471, %v1489
    %1491 = vdwg.mxu0
    %1492 = vmatpush.bf16.msra.mxu0 %v1088
    %1493 = vmatpush.bf16.msra.mxu0 %v1084
    %1494 = vmatpush.bf16.msra.mxu0 %v1080
    %1495 = vmatpush.bf16.msra.mxu0 %v1076
    %1496 = vmatpush.bf16.msra.mxu0 %v1072
    %1497 = vmatpush.bf16.msra.mxu0 %v1068
    %1498 = vmatpush.bf16.msra.mxu0 %v1064
    %1499 = vmatpush.bf16.msra.mxu0 %v1060
    %1500 = vmatmul.bf16.gmra.mxu0 %v114
    %v1501 = vpop.f32.mrf.mxu0
    %v1502 = vadd.f32 %v1483, %v1501
    %v1503 = vpop.f32.mrf.mxu0
    %v1504 = vadd.f32 %v1485, %v1503
    %1505 = vmatmul.bf16.gmra.mxu0 %v120
    %v1506 = vpop.f32.mrf.mxu0
    %v1507 = vadd.f32 %v1488, %v1506
    %v1508 = vpop.f32.mrf.mxu0
    %v1509 = vadd.f32 %v1490, %v1508
    %1510 = vdwg.mxu0
    %1511 = vmatpush.bf16.msra.mxu0 %v929
    %1512 = vmatpush.bf16.msra.mxu0 %v925
    %1513 = vmatpush.bf16.msra.mxu0 %v921
    %1514 = vmatpush.bf16.msra.mxu0 %v917
    %1515 = vmatpush.bf16.msra.mxu0 %v913
    %1516 = vmatpush.bf16.msra.mxu0 %v909
    %1517 = vmatpush.bf16.msra.mxu0 %v905
    %1518 = vmatpush.bf16.msra.mxu0 %v901
    %1519 = vmatmul.bf16.gmra.mxu0 %v109
    %v1520 = vpop.f32.mrf.mxu0
    %v1521 = vadd.f32 %v317, %v1520
    %v1522 = vpop.f32.mrf.mxu0
    %v1523 = vadd.f32 %v317, %v1522
    %1524 = vmatmul.bf16.gmra.mxu0 %v115
    %v1525 = vpop.f32.mrf.mxu0
    %v1526 = vadd.f32 %v317, %v1525
    %v1527 = vpop.f32.mrf.mxu0
    %v1528 = vadd.f32 %v317, %v1527
    %1529 = vdwg.mxu0
    %1530 = vmatpush.bf16.msra.mxu0 %v961
    %1531 = vmatpush.bf16.msra.mxu0 %v957
    %1532 = vmatpush.bf16.msra.mxu0 %v953
    %1533 = vmatpush.bf16.msra.mxu0 %v949
    %1534 = vmatpush.bf16.msra.mxu0 %v945
    %1535 = vmatpush.bf16.msra.mxu0 %v941
    %1536 = vmatpush.bf16.msra.mxu0 %v937
    %1537 = vmatpush.bf16.msra.mxu0 %v933
    %1538 = vmatmul.bf16.gmra.mxu0 %v110
    %v1539 = vpop.f32.mrf.mxu0
    %v1540 = vadd.f32 %v1521, %v1539
    %v1541 = vpop.f32.mrf.mxu0
    %v1542 = vadd.f32 %v1523, %v1541
    %1543 = vmatmul.bf16.gmra.mxu0 %v116
    %v1544 = vpop.f32.mrf.mxu0
    %v1545 = vadd.f32 %v1526, %v1544
    %v1546 = vpop.f32.mrf.mxu0
    %v1547 = vadd.f32 %v1528, %v1546
    %1548 = vdwg.mxu0
    %1549 = vmatpush.bf16.msra.mxu0 %v993
    %1550 = vmatpush.bf16.msra.mxu0 %v989
    %1551 = vmatpush.bf16.msra.mxu0 %v985
    %1552 = vmatpush.bf16.msra.mxu0 %v981
    %1553 = vmatpush.bf16.msra.mxu0 %v977
    %1554 = vmatpush.bf16.msra.mxu0 %v973
    %1555 = vmatpush.bf16.msra.mxu0 %v969
    %1556 = vmatpush.bf16.msra.mxu0 %v965
    %1557 = vmatmul.bf16.gmra.mxu0 %v111
    %v1558 = vpop.f32.mrf.mxu0
    %v1559 = vadd.f32 %v1540, %v1558
    %v1560 = vpop.f32.mrf.mxu0
    %v1561 = vadd.f32 %v1542, %v1560
    %1562 = vmatmul.bf16.gmra.mxu0 %v117
    %v1563 = vpop.f32.mrf.mxu0
    %v1564 = vadd.f32 %v1545, %v1563
    %v1565 = vpop.f32.mrf.mxu0
    %v1566 = vadd.f32 %v1547, %v1565
    %1567 = vdwg.mxu0
    %1568 = vmatpush.bf16.msra.mxu0 %v1025
    %1569 = vmatpush.bf16.msra.mxu0 %v1021
    %1570 = vmatpush.bf16.msra.mxu0 %v1017
    %1571 = vmatpush.bf16.msra.mxu0 %v1013
    %1572 = vmatpush.bf16.msra.mxu0 %v1009
    %1573 = vmatpush.bf16.msra.mxu0 %v1005
    %1574 = vmatpush.bf16.msra.mxu0 %v1001
    %1575 = vmatpush.bf16.msra.mxu0 %v997
    %1576 = vmatmul.bf16.gmra.mxu0 %v112
    %v1577 = vpop.f32.mrf.mxu0
    %v1578 = vadd.f32 %v1559, %v1577
    %v1579 = vpop.f32.mrf.mxu0
    %v1580 = vadd.f32 %v1561, %v1579
    %1581 = vmatmul.bf16.gmra.mxu0 %v118
    %v1582 = vpop.f32.mrf.mxu0
    %v1583 = vadd.f32 %v1564, %v1582
    %v1584 = vpop.f32.mrf.mxu0
    %v1585 = vadd.f32 %v1566, %v1584
    %1586 = vdwg.mxu0
    %1587 = vmatpush.bf16.msra.mxu0 %v1057
    %1588 = vmatpush.bf16.msra.mxu0 %v1053
    %1589 = vmatpush.bf16.msra.mxu0 %v1049
    %1590 = vmatpush.bf16.msra.mxu0 %v1045
    %1591 = vmatpush.bf16.msra.mxu0 %v1041
    %1592 = vmatpush.bf16.msra.mxu0 %v1037
    %1593 = vmatpush.bf16.msra.mxu0 %v1033
    %1594 = vmatpush.bf16.msra.mxu0 %v1029
    %1595 = vmatmul.bf16.gmra.mxu0 %v113
    %v1596 = vpop.f32.mrf.mxu0
    %v1597 = vadd.f32 %v1578, %v1596
    %v1598 = vpop.f32.mrf.mxu0
    %v1599 = vadd.f32 %v1580, %v1598
    %1600 = vmatmul.bf16.gmra.mxu0 %v119
    %v1601 = vpop.f32.mrf.mxu0
    %v1602 = vadd.f32 %v1583, %v1601
    %v1603 = vpop.f32.mrf.mxu0
    %v1604 = vadd.f32 %v1585, %v1603
    %1605 = vdwg.mxu0
    %1606 = vmatpush.bf16.msra.mxu0 %v1089
    %1607 = vmatpush.bf16.msra.mxu0 %v1085
    %1608 = vmatpush.bf16.msra.mxu0 %v1081
    %1609 = vmatpush.bf16.msra.mxu0 %v1077
    %1610 = vmatpush.bf16.msra.mxu0 %v1073
    %1611 = vmatpush.bf16.msra.mxu0 %v1069
    %1612 = vmatpush.bf16.msra.mxu0 %v1065
    %1613 = vmatpush.bf16.msra.mxu0 %v1061
    %1614 = vmatmul.bf16.gmra.mxu0 %v114
    %v1615 = vpop.f32.mrf.mxu0
    %v1616 = vadd.f32 %v1597, %v1615
    %v1617 = vpop.f32.mrf.mxu0
    %v1618 = vadd.f32 %v1599, %v1617
    %1619 = vmatmul.bf16.gmra.mxu0 %v120
    %v1620 = vpop.f32.mrf.mxu0
    %v1621 = vadd.f32 %v1602, %v1620
    %v1622 = vpop.f32.mrf.mxu0
    %v1623 = vadd.f32 %v1604, %v1622
    %1624 = vdwg.mxu0
    %1625 = vmatpush.bf16.msra.mxu0 %v930
    %1626 = vmatpush.bf16.msra.mxu0 %v926
    %1627 = vmatpush.bf16.msra.mxu0 %v922
    %1628 = vmatpush.bf16.msra.mxu0 %v918
    %1629 = vmatpush.bf16.msra.mxu0 %v914
    %1630 = vmatpush.bf16.msra.mxu0 %v910
    %1631 = vmatpush.bf16.msra.mxu0 %v906
    %1632 = vmatpush.bf16.msra.mxu0 %v902
    %1633 = vmatmul.bf16.gmra.mxu0 %v109
    %v1634 = vpop.f32.mrf.mxu0
    %v1635 = vadd.f32 %v318, %v1634
    %v1636 = vpop.f32.mrf.mxu0
    %v1637 = vadd.f32 %v318, %v1636
    %1638 = vmatmul.bf16.gmra.mxu0 %v115
    %v1639 = vpop.f32.mrf.mxu0
    %v1640 = vadd.f32 %v318, %v1639
    %v1641 = vpop.f32.mrf.mxu0
    %v1642 = vadd.f32 %v318, %v1641
    %1643 = vdwg.mxu0
    %1644 = vmatpush.bf16.msra.mxu0 %v962
    %1645 = vmatpush.bf16.msra.mxu0 %v958
    %1646 = vmatpush.bf16.msra.mxu0 %v954
    %1647 = vmatpush.bf16.msra.mxu0 %v950
    %1648 = vmatpush.bf16.msra.mxu0 %v946
    %1649 = vmatpush.bf16.msra.mxu0 %v942
    %1650 = vmatpush.bf16.msra.mxu0 %v938
    %1651 = vmatpush.bf16.msra.mxu0 %v934
    %1652 = vmatmul.bf16.gmra.mxu0 %v110
    %v1653 = vpop.f32.mrf.mxu0
    %v1654 = vadd.f32 %v1635, %v1653
    %v1655 = vpop.f32.mrf.mxu0
    %v1656 = vadd.f32 %v1637, %v1655
    %1657 = vmatmul.bf16.gmra.mxu0 %v116
    %v1658 = vpop.f32.mrf.mxu0
    %v1659 = vadd.f32 %v1640, %v1658
    %v1660 = vpop.f32.mrf.mxu0
    %v1661 = vadd.f32 %v1642, %v1660
    %1662 = vdwg.mxu0
    %1663 = vmatpush.bf16.msra.mxu0 %v994
    %1664 = vmatpush.bf16.msra.mxu0 %v990
    %1665 = vmatpush.bf16.msra.mxu0 %v986
    %1666 = vmatpush.bf16.msra.mxu0 %v982
    %1667 = vmatpush.bf16.msra.mxu0 %v978
    %1668 = vmatpush.bf16.msra.mxu0 %v974
    %1669 = vmatpush.bf16.msra.mxu0 %v970
    %1670 = vmatpush.bf16.msra.mxu0 %v966
    %1671 = vmatmul.bf16.gmra.mxu0 %v111
    %v1672 = vpop.f32.mrf.mxu0
    %v1673 = vadd.f32 %v1654, %v1672
    %v1674 = vpop.f32.mrf.mxu0
    %v1675 = vadd.f32 %v1656, %v1674
    %1676 = vmatmul.bf16.gmra.mxu0 %v117
    %v1677 = vpop.f32.mrf.mxu0
    %v1678 = vadd.f32 %v1659, %v1677
    %v1679 = vpop.f32.mrf.mxu0
    %v1680 = vadd.f32 %v1661, %v1679
    %1681 = vdwg.mxu0
    %1682 = vmatpush.bf16.msra.mxu0 %v1026
    %1683 = vmatpush.bf16.msra.mxu0 %v1022
    %1684 = vmatpush.bf16.msra.mxu0 %v1018
    %1685 = vmatpush.bf16.msra.mxu0 %v1014
    %1686 = vmatpush.bf16.msra.mxu0 %v1010
    %1687 = vmatpush.bf16.msra.mxu0 %v1006
    %1688 = vmatpush.bf16.msra.mxu0 %v1002
    %1689 = vmatpush.bf16.msra.mxu0 %v998
    %1690 = vmatmul.bf16.gmra.mxu0 %v112
    %v1691 = vpop.f32.mrf.mxu0
    %v1692 = vadd.f32 %v1673, %v1691
    %v1693 = vpop.f32.mrf.mxu0
    %v1694 = vadd.f32 %v1675, %v1693
    %1695 = vmatmul.bf16.gmra.mxu0 %v118
    %v1696 = vpop.f32.mrf.mxu0
    %v1697 = vadd.f32 %v1678, %v1696
    %v1698 = vpop.f32.mrf.mxu0
    %v1699 = vadd.f32 %v1680, %v1698
    %1700 = vdwg.mxu0
    %1701 = vmatpush.bf16.msra.mxu0 %v1058
    %1702 = vmatpush.bf16.msra.mxu0 %v1054
    %1703 = vmatpush.bf16.msra.mxu0 %v1050
    %1704 = vmatpush.bf16.msra.mxu0 %v1046
    %1705 = vmatpush.bf16.msra.mxu0 %v1042
    %1706 = vmatpush.bf16.msra.mxu0 %v1038
    %1707 = vmatpush.bf16.msra.mxu0 %v1034
    %1708 = vmatpush.bf16.msra.mxu0 %v1030
    %1709 = vmatmul.bf16.gmra.mxu0 %v113
    %v1710 = vpop.f32.mrf.mxu0
    %v1711 = vadd.f32 %v1692, %v1710
    %v1712 = vpop.f32.mrf.mxu0
    %v1713 = vadd.f32 %v1694, %v1712
    %1714 = vmatmul.bf16.gmra.mxu0 %v119
    %v1715 = vpop.f32.mrf.mxu0
    %v1716 = vadd.f32 %v1697, %v1715
    %v1717 = vpop.f32.mrf.mxu0
    %v1718 = vadd.f32 %v1699, %v1717
    %1719 = vdwg.mxu0
    %1720 = vmatpush.bf16.msra.mxu0 %v1090
    %1721 = vmatpush.bf16.msra.mxu0 %v1086
    %1722 = vmatpush.bf16.msra.mxu0 %v1082
    %1723 = vmatpush.bf16.msra.mxu0 %v1078
    %1724 = vmatpush.bf16.msra.mxu0 %v1074
    %1725 = vmatpush.bf16.msra.mxu0 %v1070
    %1726 = vmatpush.bf16.msra.mxu0 %v1066
    %1727 = vmatpush.bf16.msra.mxu0 %v1062
    %1728 = vmatmul.bf16.gmra.mxu0 %v114
    %v1729 = vpop.f32.mrf.mxu0
    %v1730 = vadd.f32 %v1711, %v1729
    %v1731 = vpop.f32.mrf.mxu0
    %v1732 = vadd.f32 %v1713, %v1731
    %1733 = vmatmul.bf16.gmra.mxu0 %v120
    %v1734 = vpop.f32.mrf.mxu0
    %v1735 = vadd.f32 %v1716, %v1734
    %v1736 = vpop.f32.mrf.mxu0
    %v1737 = vadd.f32 %v1718, %v1736
    %1738 = vdwg.mxu0
    %v1739 = vmax.f32 %v1388, 0.0
    %v1740 = vmax.f32 %v1502, 0.0
    %v1741 = vmax.f32 %v1616, 0.0
    %v1742 = vmax.f32 %v1730, 0.0
    %v1743 = vmax.f32 %v1390, 0.0
    %v1744 = vmax.f32 %v1504, 0.0
    %v1745 = vmax.f32 %v1618, 0.0
    %v1746 = vmax.f32 %v1732, 0.0
    %v1747 = vmax.f32 %v1393, 0.0
    %v1748 = vmax.f32 %v1507, 0.0
    %v1749 = vmax.f32 %v1621, 0.0
    %v1750 = vmax.f32 %v1735, 0.0
    %v1751 = vmax.f32 %v1395, 0.0
    %v1752 = vmax.f32 %v1509, 0.0
    %v1753 = vmax.f32 %v1623, 0.0
    %v1754 = vmax.f32 %v1737, 0.0
    %v1755 = vpack.c.bf16 %v1743, %v1739
    %v1756 = vpack.c.bf16 %v1744, %v1740
    %v1757 = vpack.c.bf16 %v1745, %v1741
    %v1758 = vpack.c.bf16 %v1746, %v1742
    %v1759 = vpack.c.bf16 %v1751, %v1747
    %v1760 = vpack.c.bf16 %v1752, %v1748
    %v1761 = vpack.c.bf16 %v1753, %v1749
    %v1762 = vpack.c.bf16 %v1754, %v1750
    %v1763 = vld [vmem:[#allocation8] sm:$0xff]
    %v1764 = vld [vmem:[#allocation8 + $0x8] sm:$0xff]
    %v1765 = vld [vmem:[#allocation8 + $0x10] sm:$0xff]
    %v1766 = vld [vmem:[#allocation8 + $0x18] sm:$0xff]
    %v1767 = vld [vmem:[#allocation8 + $0x20] sm:$0xff]
    %v1768 = vld [vmem:[#allocation8 + $0x28] sm:$0xff]
    %v1769 = vld [vmem:[#allocation8 + $0x30] sm:$0xff]
    %v1770 = vld [vmem:[#allocation8 + $0x38] sm:$0xff]
    %v1771 = vld [vmem:[#allocation8 + $0x40] sm:$0xff]
    %v1772 = vld [vmem:[#allocation8 + $0x48] sm:$0xff]
    %v1773 = vld [vmem:[#allocation8 + $0x50] sm:$0xff]
    %v1774 = vld [vmem:[#allocation8 + $0x58] sm:$0xff]
    %v1775 = vld [vmem:[#allocation8 + $0x60] sm:$0xff]
    %v1776 = vld [vmem:[#allocation8 + $0x68] sm:$0xff]
    %v1777 = vld [vmem:[#allocation8 + $0x70] sm:$0xff]
    %v1778 = vld [vmem:[#allocation8 + $0x78] sm:$0xff]
    %v1779 = vld [vmem:[#allocation8 + $0x80] sm:$0xff]
    %v1780 = vld [vmem:[#allocation8 + $0x88] sm:$0xff]
    %v1781 = vld [vmem:[#allocation8 + $0x90] sm:$0xff]
    %v1782 = vld [vmem:[#allocation8 + $0x98] sm:$0xff]
    %v1783 = vld [vmem:[#allocation8 + $0xa0] sm:$0xff]
    %v1784 = vld [vmem:[#allocation8 + $0xa8] sm:$0xff]
    %v1785 = vld [vmem:[#allocation8 + $0xb0] sm:$0xff]
    %v1786 = vld [vmem:[#allocation8 + $0xb8] sm:$0xff]
    %v1787 = vld [vmem:[#allocation8 + $0xc0] sm:$0xff]
    %v1788 = vld [vmem:[#allocation8 + $0xc8] sm:$0xff]
    %v1789 = vld [vmem:[#allocation8 + $0xd0] sm:$0xff]
    %v1790 = vld [vmem:[#allocation8 + $0xd8] sm:$0xff]
    %v1791 = vld [vmem:[#allocation8 + $0xe0] sm:$0xff]
    %v1792 = vld [vmem:[#allocation8 + $0xe8] sm:$0xff]
    %v1793 = vld [vmem:[#allocation8 + $0xf0] sm:$0xff]
    %v1794 = vld [vmem:[#allocation8 + $0xf8] sm:$0xff]
    %v1795 = vld [vmem:[#allocation8 + $0x100] sm:$0xff]
    %v1796 = vld [vmem:[#allocation8 + $0x108] sm:$0xff]
    %v1797 = vld [vmem:[#allocation8 + $0x110] sm:$0xff]
    %v1798 = vld [vmem:[#allocation8 + $0x118] sm:$0xff]
    %v1799 = vld [vmem:[#allocation8 + $0x120] sm:$0xff]
    %v1800 = vld [vmem:[#allocation8 + $0x128] sm:$0xff]
    %v1801 = vld [vmem:[#allocation8 + $0x130] sm:$0xff]
    %v1802 = vld [vmem:[#allocation8 + $0x138] sm:$0xff]
    %v1803 = vld [vmem:[#allocation8 + $0x140] sm:$0xff]
    %v1804 = vld [vmem:[#allocation8 + $0x148] sm:$0xff]
    %v1805 = vld [vmem:[#allocation8 + $0x150] sm:$0xff]
    %v1806 = vld [vmem:[#allocation8 + $0x158] sm:$0xff]
    %v1807 = vld [vmem:[#allocation8 + $0x160] sm:$0xff]
    %v1808 = vld [vmem:[#allocation8 + $0x168] sm:$0xff]
    %v1809 = vld [vmem:[#allocation8 + $0x170] sm:$0xff]
    %v1810 = vld [vmem:[#allocation8 + $0x178] sm:$0xff]
    %v1811 = vld [vmem:[#allocation8 + $0x180] sm:$0xff]
    %v1812 = vld [vmem:[#allocation8 + $0x188] sm:$0xff]
    %v1813 = vld [vmem:[#allocation8 + $0x190] sm:$0xff]
    %v1814 = vld [vmem:[#allocation8 + $0x198] sm:$0xff]
    %v1815 = vld [vmem:[#allocation8 + $0x1a0] sm:$0xff]
    %v1816 = vld [vmem:[#allocation8 + $0x1a8] sm:$0xff]
    %v1817 = vld [vmem:[#allocation8 + $0x1b0] sm:$0xff]
    %v1818 = vld [vmem:[#allocation8 + $0x1b8] sm:$0xff]
    %v1819 = vld [vmem:[#allocation8 + $0x1c0] sm:$0xff]
    %v1820 = vld [vmem:[#allocation8 + $0x1c8] sm:$0xff]
    %v1821 = vld [vmem:[#allocation8 + $0x1d0] sm:$0xff]
    %v1822 = vld [vmem:[#allocation8 + $0x1d8] sm:$0xff]
    %v1823 = vld [vmem:[#allocation8 + $0x1e0] sm:$0xff]
    %v1824 = vld [vmem:[#allocation8 + $0x1e8] sm:$0xff]
    %v1825 = vld [vmem:[#allocation8 + $0x1f0] sm:$0xff]
    %v1826 = vld [vmem:[#allocation8 + $0x1f8] sm:$0xff]
    %v1827 = vld [vmem:[%s4] sm:$0x3]
    %v1829 = vperm.slane %v1827, 0
    %v1830 = vperm.slane %v1827, 1
    %v1897 = vunpack.c.l.b16 %v1763
    %v1898 = vunpack.c.h.b16 %v1763
    %v1899 = vunpack.c.l.b16 %v1764
    %v1900 = vunpack.c.h.b16 %v1764
    %v1901 = vunpack.c.l.b16 %v1765
    %v1902 = vunpack.c.h.b16 %v1765
    %v1903 = vunpack.c.l.b16 %v1766
    %v1904 = vunpack.c.h.b16 %v1766
    %v1905 = vunpack.c.l.b16 %v1767
    %v1906 = vunpack.c.h.b16 %v1767
    %v1907 = vunpack.c.l.b16 %v1768
    %v1908 = vunpack.c.h.b16 %v1768
    %v1909 = vunpack.c.l.b16 %v1769
    %v1910 = vunpack.c.h.b16 %v1769
    %v1911 = vunpack.c.l.b16 %v1770
    %v1912 = vunpack.c.h.b16 %v1770
    %v1913 = vunpack.c.l.b16 %v1771
    %v1914 = vunpack.c.h.b16 %v1771
    %v1915 = vunpack.c.l.b16 %v1772
    %v1916 = vunpack.c.h.b16 %v1772
    %v1917 = vunpack.c.l.b16 %v1773
    %v1918 = vunpack.c.h.b16 %v1773
    %v1919 = vunpack.c.l.b16 %v1774
    %v1920 = vunpack.c.h.b16 %v1774
    %v1921 = vunpack.c.l.b16 %v1775
    %v1922 = vunpack.c.h.b16 %v1775
    %v1923 = vunpack.c.l.b16 %v1776
    %v1924 = vunpack.c.h.b16 %v1776
    %v1925 = vunpack.c.l.b16 %v1777
    %v1926 = vunpack.c.h.b16 %v1777
    %v1927 = vunpack.c.l.b16 %v1778
    %v1928 = vunpack.c.h.b16 %v1778
    %v1929 = vunpack.c.l.b16 %v1779
    %v1930 = vunpack.c.h.b16 %v1779
    %v1931 = vunpack.c.l.b16 %v1780
    %v1932 = vunpack.c.h.b16 %v1780
    %v1933 = vunpack.c.l.b16 %v1781
    %v1934 = vunpack.c.h.b16 %v1781
    %v1935 = vunpack.c.l.b16 %v1782
    %v1936 = vunpack.c.h.b16 %v1782
    %v1937 = vunpack.c.l.b16 %v1783
    %v1938 = vunpack.c.h.b16 %v1783
    %v1939 = vunpack.c.l.b16 %v1784
    %v1940 = vunpack.c.h.b16 %v1784
    %v1941 = vunpack.c.l.b16 %v1785
    %v1942 = vunpack.c.h.b16 %v1785
    %v1943 = vunpack.c.l.b16 %v1786
    %v1944 = vunpack.c.h.b16 %v1786
    %v1945 = vunpack.c.l.b16 %v1787
    %v1946 = vunpack.c.h.b16 %v1787
    %v1947 = vunpack.c.l.b16 %v1788
    %v1948 = vunpack.c.h.b16 %v1788
    %v1949 = vunpack.c.l.b16 %v1789
    %v1950 = vunpack.c.h.b16 %v1789
    %v1951 = vunpack.c.l.b16 %v1790
    %v1952 = vunpack.c.h.b16 %v1790
    %v1953 = vunpack.c.l.b16 %v1791
    %v1954 = vunpack.c.h.b16 %v1791
    %v1955 = vunpack.c.l.b16 %v1792
    %v1956 = vunpack.c.h.b16 %v1792
    %v1957 = vunpack.c.l.b16 %v1793
    %v1958 = vunpack.c.h.b16 %v1793
    %v1959 = vunpack.c.l.b16 %v1794
    %v1960 = vunpack.c.h.b16 %v1794
    %v1961 = vunpack.c.l.b16 %v1795
    %v1962 = vunpack.c.h.b16 %v1795
    %v1963 = vunpack.c.l.b16 %v1796
    %v1964 = vunpack.c.h.b16 %v1796
    %v1965 = vunpack.c.l.b16 %v1797
    %v1966 = vunpack.c.h.b16 %v1797
    %v1967 = vunpack.c.l.b16 %v1798
    %v1968 = vunpack.c.h.b16 %v1798
    %v1969 = vunpack.c.l.b16 %v1799
    %v1970 = vunpack.c.h.b16 %v1799
    %v1971 = vunpack.c.l.b16 %v1800
    %v1972 = vunpack.c.h.b16 %v1800
    %v1973 = vunpack.c.l.b16 %v1801
    %v1974 = vunpack.c.h.b16 %v1801
    %v1975 = vunpack.c.l.b16 %v1802
    %v1976 = vunpack.c.h.b16 %v1802
    %v1977 = vunpack.c.l.b16 %v1803
    %v1978 = vunpack.c.h.b16 %v1803
    %v1979 = vunpack.c.l.b16 %v1804
    %v1980 = vunpack.c.h.b16 %v1804
    %v1981 = vunpack.c.l.b16 %v1805
    %v1982 = vunpack.c.h.b16 %v1805
    %v1983 = vunpack.c.l.b16 %v1806
    %v1984 = vunpack.c.h.b16 %v1806
    %v1985 = vunpack.c.l.b16 %v1807
    %v1986 = vunpack.c.h.b16 %v1807
    %v1987 = vunpack.c.l.b16 %v1808
    %v1988 = vunpack.c.h.b16 %v1808
    %v1989 = vunpack.c.l.b16 %v1809
    %v1990 = vunpack.c.h.b16 %v1809
    %v1991 = vunpack.c.l.b16 %v1810
    %v1992 = vunpack.c.h.b16 %v1810
    %v1993 = vunpack.c.l.b16 %v1811
    %v1994 = vunpack.c.h.b16 %v1811
    %v1995 = vunpack.c.l.b16 %v1812
    %v1996 = vunpack.c.h.b16 %v1812
    %v1997 = vunpack.c.l.b16 %v1813
    %v1998 = vunpack.c.h.b16 %v1813
    %v1999 = vunpack.c.l.b16 %v1814
    %v2000 = vunpack.c.h.b16 %v1814
    %v2001 = vunpack.c.l.b16 %v1815
    %v2002 = vunpack.c.h.b16 %v1815
    %v2003 = vunpack.c.l.b16 %v1816
    %v2004 = vunpack.c.h.b16 %v1816
    %v2005 = vunpack.c.l.b16 %v1817
    %v2006 = vunpack.c.h.b16 %v1817
    %v2007 = vunpack.c.l.b16 %v1818
    %v2008 = vunpack.c.h.b16 %v1818
    %v2009 = vunpack.c.l.b16 %v1819
    %v2010 = vunpack.c.h.b16 %v1819
    %v2011 = vunpack.c.l.b16 %v1820
    %v2012 = vunpack.c.h.b16 %v1820
    %v2013 = vunpack.c.l.b16 %v1821
    %v2014 = vunpack.c.h.b16 %v1821
    %v2015 = vunpack.c.l.b16 %v1822
    %v2016 = vunpack.c.h.b16 %v1822
    %v2017 = vunpack.c.l.b16 %v1823
    %v2018 = vunpack.c.h.b16 %v1823
    %v2019 = vunpack.c.l.b16 %v1824
    %v2020 = vunpack.c.h.b16 %v1824
    %v2021 = vunpack.c.l.b16 %v1825
    %v2022 = vunpack.c.h.b16 %v1825
    %v2023 = vunpack.c.l.b16 %v1826
    %v2024 = vunpack.c.h.b16 %v1826
    %v2025 = vpack.c.b16 %v1899, %v1897
    %v2026 = vpack.c.b16 %v1900, %v1898
    %v2027 = vpack.c.b16 %v1903, %v1901
    %v2028 = vpack.c.b16 %v1904, %v1902
    %v2029 = vpack.c.b16 %v1907, %v1905
    %v2030 = vpack.c.b16 %v1908, %v1906
    %v2031 = vpack.c.b16 %v1911, %v1909
    %v2032 = vpack.c.b16 %v1912, %v1910
    %v2033 = vpack.c.b16 %v1915, %v1913
    %v2034 = vpack.c.b16 %v1916, %v1914
    %v2035 = vpack.c.b16 %v1919, %v1917
    %v2036 = vpack.c.b16 %v1920, %v1918
    %v2037 = vpack.c.b16 %v1923, %v1921
    %v2038 = vpack.c.b16 %v1924, %v1922
    %v2039 = vpack.c.b16 %v1927, %v1925
    %v2040 = vpack.c.b16 %v1928, %v1926
    %v2041 = vpack.c.b16 %v1931, %v1929
    %v2042 = vpack.c.b16 %v1932, %v1930
    %v2043 = vpack.c.b16 %v1935, %v1933
    %v2044 = vpack.c.b16 %v1936, %v1934
    %v2045 = vpack.c.b16 %v1939, %v1937
    %v2046 = vpack.c.b16 %v1940, %v1938
    %v2047 = vpack.c.b16 %v1943, %v1941
    %v2048 = vpack.c.b16 %v1944, %v1942
    %v2049 = vpack.c.b16 %v1947, %v1945
    %v2050 = vpack.c.b16 %v1948, %v1946
    %v2051 = vpack.c.b16 %v1951, %v1949
    %v2052 = vpack.c.b16 %v1952, %v1950
    %v2053 = vpack.c.b16 %v1955, %v1953
    %v2054 = vpack.c.b16 %v1956, %v1954
    %v2055 = vpack.c.b16 %v1959, %v1957
    %v2056 = vpack.c.b16 %v1960, %v1958
    %v2057 = vpack.c.b16 %v1963, %v1961
    %v2058 = vpack.c.b16 %v1964, %v1962
    %v2059 = vpack.c.b16 %v1967, %v1965
    %v2060 = vpack.c.b16 %v1968, %v1966
    %v2061 = vpack.c.b16 %v1971, %v1969
    %v2062 = vpack.c.b16 %v1972, %v1970
    %v2063 = vpack.c.b16 %v1975, %v1973
    %v2064 = vpack.c.b16 %v1976, %v1974
    %v2065 = vpack.c.b16 %v1979, %v1977
    %v2066 = vpack.c.b16 %v1980, %v1978
    %v2067 = vpack.c.b16 %v1983, %v1981
    %v2068 = vpack.c.b16 %v1984, %v1982
    %v2069 = vpack.c.b16 %v1987, %v1985
    %v2070 = vpack.c.b16 %v1988, %v1986
    %v2071 = vpack.c.b16 %v1991, %v1989
    %v2072 = vpack.c.b16 %v1992, %v1990
    %v2073 = vpack.c.b16 %v1995, %v1993
    %v2074 = vpack.c.b16 %v1996, %v1994
    %v2075 = vpack.c.b16 %v1999, %v1997
    %v2076 = vpack.c.b16 %v2000, %v1998
    %v2077 = vpack.c.b16 %v2003, %v2001
    %v2078 = vpack.c.b16 %v2004, %v2002
    %v2079 = vpack.c.b16 %v2007, %v2005
    %v2080 = vpack.c.b16 %v2008, %v2006
    %v2081 = vpack.c.b16 %v2011, %v2009
    %v2082 = vpack.c.b16 %v2012, %v2010
    %v2083 = vpack.c.b16 %v2015, %v2013
    %v2084 = vpack.c.b16 %v2016, %v2014
    %v2085 = vpack.c.b16 %v2019, %v2017
    %v2086 = vpack.c.b16 %v2020, %v2018
    %v2087 = vpack.c.b16 %v2023, %v2021
    %v2088 = vpack.c.b16 %v2024, %v2022
    %2153 = vmatpush.bf16.msra.mxu0 %v2039
    %2154 = vmatpush.bf16.msra.mxu0 %v2037
    %2155 = vmatpush.bf16.msra.mxu0 %v2035
    %2156 = vmatpush.bf16.msra.mxu0 %v2033
    %2157 = vmatpush.bf16.msra.mxu0 %v2031
    %2158 = vmatpush.bf16.msra.mxu0 %v2029
    %2159 = vmatpush.bf16.msra.mxu0 %v2027
    %2160 = vmatpush.bf16.msra.mxu0 %v2025
    %2161 = vmatmul.bf16.gmra.mxu0 %v1755
    %v2162 = vpop.f32.mrf.mxu0
    %v2163 = vadd.f32 %v1829, %v2162
    %v2164 = vpop.f32.mrf.mxu0
    %v2165 = vadd.f32 %v1829, %v2164
    %2166 = vmatmul.bf16.gmra.mxu0 %v1759
    %v2167 = vpop.f32.mrf.mxu0
    %v2168 = vadd.f32 %v1829, %v2167
    %v2169 = vpop.f32.mrf.mxu0
    %v2170 = vadd.f32 %v1829, %v2169
    %2171 = vdwg.mxu0
    %2172 = vmatpush.bf16.msra.mxu0 %v2055
    %2173 = vmatpush.bf16.msra.mxu0 %v2053
    %2174 = vmatpush.bf16.msra.mxu0 %v2051
    %2175 = vmatpush.bf16.msra.mxu0 %v2049
    %2176 = vmatpush.bf16.msra.mxu0 %v2047
    %2177 = vmatpush.bf16.msra.mxu0 %v2045
    %2178 = vmatpush.bf16.msra.mxu0 %v2043
    %2179 = vmatpush.bf16.msra.mxu0 %v2041
    %2180 = vmatmul.bf16.gmra.mxu0 %v1756
    %v2181 = vpop.f32.mrf.mxu0
    %v2182 = vadd.f32 %v2163, %v2181
    %v2183 = vpop.f32.mrf.mxu0
    %v2184 = vadd.f32 %v2165, %v2183
    %2185 = vmatmul.bf16.gmra.mxu0 %v1760
    %v2186 = vpop.f32.mrf.mxu0
    %v2187 = vadd.f32 %v2168, %v2186
    %v2188 = vpop.f32.mrf.mxu0
    %v2189 = vadd.f32 %v2170, %v2188
    %2190 = vdwg.mxu0
    %2191 = vmatpush.bf16.msra.mxu0 %v2071
    %2192 = vmatpush.bf16.msra.mxu0 %v2069
    %2193 = vmatpush.bf16.msra.mxu0 %v2067
    %2194 = vmatpush.bf16.msra.mxu0 %v2065
    %2195 = vmatpush.bf16.msra.mxu0 %v2063
    %2196 = vmatpush.bf16.msra.mxu0 %v2061
    %2197 = vmatpush.bf16.msra.mxu0 %v2059
    %2198 = vmatpush.bf16.msra.mxu0 %v2057
    %2199 = vmatmul.bf16.gmra.mxu0 %v1757
    %v2200 = vpop.f32.mrf.mxu0
    %v2201 = vadd.f32 %v2182, %v2200
    %v2202 = vpop.f32.mrf.mxu0
    %v2203 = vadd.f32 %v2184, %v2202
    %2204 = vmatmul.bf16.gmra.mxu0 %v1761
    %v2205 = vpop.f32.mrf.mxu0
    %v2206 = vadd.f32 %v2187, %v2205
    %v2207 = vpop.f32.mrf.mxu0
    %v2208 = vadd.f32 %v2189, %v2207
    %2209 = vdwg.mxu0
    %2210 = vmatpush.bf16.msra.mxu0 %v2087
    %2211 = vmatpush.bf16.msra.mxu0 %v2085
    %2212 = vmatpush.bf16.msra.mxu0 %v2083
    %2213 = vmatpush.bf16.msra.mxu0 %v2081
    %2214 = vmatpush.bf16.msra.mxu0 %v2079
    %2215 = vmatpush.bf16.msra.mxu0 %v2077
    %2216 = vmatpush.bf16.msra.mxu0 %v2075
    %2217 = vmatpush.bf16.msra.mxu0 %v2073
    %2218 = vmatmul.bf16.gmra.mxu0 %v1758
    %v2219 = vpop.f32.mrf.mxu0
    %v2220 = vadd.f32 %v2201, %v2219
    %v2221 = vpop.f32.mrf.mxu0
    %v2222 = vadd.f32 %v2203, %v2221
    %2223 = vmatmul.bf16.gmra.mxu0 %v1762
    %v2224 = vpop.f32.mrf.mxu0
    %v2225 = vadd.f32 %v2206, %v2224
    %v2226 = vpop.f32.mrf.mxu0
    %v2227 = vadd.f32 %v2208, %v2226
    %2228 = vdwg.mxu0
    %2229 = vmatpush.bf16.msra.mxu0 %v2040
    %2230 = vmatpush.bf16.msra.mxu0 %v2038
    %2231 = vmatpush.bf16.msra.mxu0 %v2036
    %2232 = vmatpush.bf16.msra.mxu0 %v2034
    %2233 = vmatpush.bf16.msra.mxu0 %v2032
    %2234 = vmatpush.bf16.msra.mxu0 %v2030
    %2235 = vmatpush.bf16.msra.mxu0 %v2028
    %2236 = vmatpush.bf16.msra.mxu0 %v2026
    %2237 = vmatmul.bf16.gmra.mxu0 %v1755
    %v2238 = vpop.f32.mrf.mxu0
    %v2239 = vadd.f32 %v1830, %v2238
    %v2240 = vpop.f32.mrf.mxu0
    %v2241 = vadd.f32 %v1830, %v2240
    %2242 = vmatmul.bf16.gmra.mxu0 %v1759
    %v2243 = vpop.f32.mrf.mxu0
    %v2244 = vadd.f32 %v1830, %v2243
    %v2245 = vpop.f32.mrf.mxu0
    %v2246 = vadd.f32 %v1830, %v2245
    %2247 = vdwg.mxu0
    %2248 = vmatpush.bf16.msra.mxu0 %v2056
    %2249 = vmatpush.bf16.msra.mxu0 %v2054
    %2250 = vmatpush.bf16.msra.mxu0 %v2052
    %2251 = vmatpush.bf16.msra.mxu0 %v2050
    %2252 = vmatpush.bf16.msra.mxu0 %v2048
    %2253 = vmatpush.bf16.msra.mxu0 %v2046
    %2254 = vmatpush.bf16.msra.mxu0 %v2044
    %2255 = vmatpush.bf16.msra.mxu0 %v2042
    %2256 = vmatmul.bf16.gmra.mxu0 %v1756
    %v2257 = vpop.f32.mrf.mxu0
    %v2258 = vadd.f32 %v2239, %v2257
    %v2259 = vpop.f32.mrf.mxu0
    %v2260 = vadd.f32 %v2241, %v2259
    %2261 = vmatmul.bf16.gmra.mxu0 %v1760
    %v2262 = vpop.f32.mrf.mxu0
    %v2263 = vadd.f32 %v2244, %v2262
    %v2264 = vpop.f32.mrf.mxu0
    %v2265 = vadd.f32 %v2246, %v2264
    %2266 = vdwg.mxu0
    %2267 = vmatpush.bf16.msra.mxu0 %v2072
    %2268 = vmatpush.bf16.msra.mxu0 %v2070
    %2269 = vmatpush.bf16.msra.mxu0 %v2068
    %2270 = vmatpush.bf16.msra.mxu0 %v2066
    %2271 = vmatpush.bf16.msra.mxu0 %v2064
    %2272 = vmatpush.bf16.msra.mxu0 %v2062
    %2273 = vmatpush.bf16.msra.mxu0 %v2060
    %2274 = vmatpush.bf16.msra.mxu0 %v2058
    %2275 = vmatmul.bf16.gmra.mxu0 %v1757
    %v2276 = vpop.f32.mrf.mxu0
    %v2277 = vadd.f32 %v2258, %v2276
    %v2278 = vpop.f32.mrf.mxu0
    %v2279 = vadd.f32 %v2260, %v2278
    %2280 = vmatmul.bf16.gmra.mxu0 %v1761
    %v2281 = vpop.f32.mrf.mxu0
    %v2282 = vadd.f32 %v2263, %v2281
    %v2283 = vpop.f32.mrf.mxu0
    %v2284 = vadd.f32 %v2265, %v2283
    %2285 = vdwg.mxu0
    %2286 = vmatpush.bf16.msra.mxu0 %v2088
    %2287 = vmatpush.bf16.msra.mxu0 %v2086
    %2288 = vmatpush.bf16.msra.mxu0 %v2084
    %2289 = vmatpush.bf16.msra.mxu0 %v2082
    %2290 = vmatpush.bf16.msra.mxu0 %v2080
    %2291 = vmatpush.bf16.msra.mxu0 %v2078
    %2292 = vmatpush.bf16.msra.mxu0 %v2076
    %2293 = vmatpush.bf16.msra.mxu0 %v2074
    %2294 = vmatmul.bf16.gmra.mxu0 %v1758
    %v2295 = vpop.f32.mrf.mxu0
    %v2296 = vadd.f32 %v2277, %v2295
    %v2297 = vpop.f32.mrf.mxu0
    %v2298 = vadd.f32 %v2279, %v2297
    %2299 = vmatmul.bf16.gmra.mxu0 %v1762
    %v2300 = vpop.f32.mrf.mxu0
    %v2301 = vadd.f32 %v2282, %v2300
    %v2302 = vpop.f32.mrf.mxu0
    %v2303 = vadd.f32 %v2284, %v2302
    %2304 = vdwg.mxu0
    %v2305 = vmax.f32 %v2220, 0.0
    %v2306 = vmax.f32 %v2296, 0.0
    %v2307 = vmax.f32 %v2222, 0.0
    %v2308 = vmax.f32 %v2298, 0.0
    %v2309 = vmax.f32 %v2225, 0.0
    %v2310 = vmax.f32 %v2301, 0.0
    %v2311 = vmax.f32 %v2227, 0.0
    %v2312 = vmax.f32 %v2303, 0.0
    %v2313 = vld [vmem:[%s5] sm:$0x3]
    %v2315 = vperm.slane %v2313, 0
    %v2316 = vperm.slane %v2313, 1
    %v2319 = vmul.f32 %v2305, %v2315
    %v2320 = vmul.f32 %v2306, %v2316
    %v2321 = vmul.f32 %v2307, %v2315
    %v2322 = vmul.f32 %v2308, %v2316
    %v2323 = vmul.f32 %v2309, %v2315
    %v2324 = vmul.f32 %v2310, %v2316
    %v2325 = vmul.f32 %v2311, %v2315
    %v2326 = vmul.f32 %v2312, %v2316
    %v2327 = vadd.f32 %v2319, %v2320
    %2328 = vadd.xlane.f32.xlu0 %v2327
    %v2329 = vpop.xlane.xlu0 %2328
    %v2330 = vadd.f32 %v2321, %v2322
    %2331 = vadd.xlane.f32.xlu0 %v2330
    %v2332 = vpop.xlane.xlu0 %2331
    %v2333 = vadd.f32 %v2323, %v2324
    %2334 = vadd.xlane.f32.xlu0 %v2333
    %v2335 = vpop.xlane.xlu0 %2334
    %v2336 = vadd.f32 %v2325, %v2326
    %2337 = vadd.xlane.f32.xlu0 %v2336
    %v2338 = vpop.xlane.xlu0 %2337
    %v2343 = vlaneseq
    %v2344 = vand.u32 %v2343, 127
    %v2345 = vperm.slane %v2329, %v2344
    %v2346 = vadd.s32 %v2344, 4294967288
    %v2347 = vperm.slane %v2332, %v2346
    %vm2348 = vcmask 130112
    %v2349 = vsel %vm2348, %v2347, %v2345
    %v2350 = vperm.slane %v2335, %v2344
    %v2351 = vperm.slane %v2338, %v2346
    %v2352 = vsel %vm2348, %v2351, %v2350
    %vm2353 = vcmask 1041409
    %v2354 = vsel %vm2353, %v2352, %v2349
    %vm2356 = vcmask 123904
    %v2357 = vsel %vm2356, %v2354, -inf
    %2358 = vmax.xlane.f32.xlu0 %v2357
    %v2359 = vpop.xlane.xlu0 %2358
    %v2361 = vperm.slane %v2359, 0
    %v2362 = vperm.slane %v2359, 1
    %v2365 = vsub.f32 %v2329, %v2361
    %v2366 = vsub.f32 %v2332, %v2361
    %v2367 = vsub.f32 %v2335, %v2362
    %v2368 = vsub.f32 %v2338, %v2362
    %v2369 = vmul.f32 %v2365, 1.442695
    %v2370 = vpow.pop %v2369
    %v2371 = vmul.f32 %v2366, 1.442695
    %v2372 = vpow.pop %v2371
    %v2373 = vmul.f32 %v2367, 1.442695
    %v2374 = vpow.pop %v2373
    %v2375 = vmul.f32 %v2368, 1.442695
    %v2376 = vpow.pop %v2375
    %2381 = vset.pattern.permute.xlu0 0
    %2382 = vperm.xlu0 %2381, %v2370
    %v2383 = vpop.permute.xlu0 %2382
    %2384 = vset.pattern.permute.xlu0 0
    %2385 = vperm.xlu0 %2384, %v2372
    %v2386 = vpop.permute.xlu0 %2385
    %2387 = vset.pattern.permute.xlu0 0
    %2388 = vperm.xlu0 %2387, %v2374
    %v2389 = vpop.permute.xlu0 %2388
    %2390 = vset.pattern.permute.xlu0 0
    %2391 = vperm.xlu0 %2390, %v2376
    %v2392 = vpop.permute.xlu0 %2391
    %v2393 = vperm.slane %v2383, %v2344
    %v2394 = vperm.slane %v2386, %v2346
    %v2395 = vsel %vm2348, %v2394, %v2393
    %v2396 = vperm.slane %v2389, %v2344
    %v2397 = vperm.slane %v2392, %v2346
    %v2398 = vsel %vm2348, %v2397, %v2396
    %v2399 = vsel %vm2353, %v2398, %v2395
    %v2401 = vsel %vm2356, %v2399, 0.0
    %2402 = vadd.xlane.f32.xlu0 %v2401
    %v2403 = vpop.xlane.xlu0 %2402
    %v2404 = vlog2.pop %v2403
    %v2405 = vmul.f32 %v2404, 0.6931472
    %v2406 = vadd.f32 %v2359, %v2405
    %v2408 = vperm.slane %v2406, 0
    %v2409 = vperm.slane %v2406, 1
    %v2412 = vsub.f32 %v2329, %v2408
    %v2413 = vsub.f32 %v2332, %v2408
    %v2414 = vsub.f32 %v2335, %v2409
    %v2415 = vsub.f32 %v2338, %v2409
    %2420 = vset.pattern.permute.xlu0 0
    %2421 = vperm.xlu0 %2420, %v2412
    %v2422 = vpop.permute.xlu0 %2421
    %2423 = vset.pattern.permute.xlu0 0
    %2424 = vperm.xlu0 %2423, %v2413
    %v2425 = vpop.permute.xlu0 %2424
    %2426 = vset.pattern.permute.xlu0 0
    %2427 = vperm.xlu0 %2426, %v2414
    %v2428 = vpop.permute.xlu0 %2427
    %2429 = vset.pattern.permute.xlu0 0
    %2430 = vperm.xlu0 %2429, %v2415
    %v2431 = vpop.permute.xlu0 %2430
    %v2432 = vperm.slane %v2422, %v2344
    %v2433 = vperm.slane %v2425, %v2346
    %v2434 = vsel %vm2348, %v2433, %v2432
    %v2435 = vperm.slane %v2428, %v2344
    %v2436 = vperm.slane %v2431, %v2346
    %v2437 = vsel %vm2348, %v2436, %v2435
    %v2438 = vsel %vm2353, %v2437, %v2434
    %2440 = vst.msk [vmem:[#allocation10] sm:$0x3] %vm2356, %v2438
    // Predicated region
    $region42: #{tpu_custom_call.1} parent=1 // pred_check
      _
    $region43: #{tpu_custom_call.1} parent=1 // pred_check_branch
      %2442 = sbr.rel (0) target = $region45
    $region44: #{tpu_custom_call.1} parent=1 // pred_region
      %2444 = vsyncadd [#allocation4], 0
      %s2446 = sshll.u32 [#allocation10], 4
      %s2447 = int_to_ptr.vmem [resolvable:$true] %s2446
      %s2448 = sshll.u32 %s6, 4
      %s2449 = int_to_ptr.hbm [resolvable:$true] %s2448
      %2451 = dma.vmem_to_hbm [thread:$0]  %s2447, 32, %s2449, [#allocation4]
    $region45: #{tpu_custom_call.1} parent=1 // pred_fallthru
      _
    // Predicated region
    $region46: #{tpu_custom_call.1} parent=1 // pred_check
      _
    $region47: #{tpu_custom_call.1} parent=1 // pred_check_branch
      %2453 = sbr.rel (0) target = $region49
    $region48: #{tpu_custom_call.1} parent=1 // pred_region
      %2455 = dma.done [#allocation4], 32
    $region49: #{tpu_custom_call.1} parent=1 // pred_fallthru
      _
    %2456 = vsyncpa [#allocation3], 1
    %2457 = vsyncpa [#allocation6], 1
    %2458 = vsyncpa [#allocation9], 1
    %2459 = vsyncpa [#allocation4], 1

</llo_original>
